<compile_context>
chip_gen: v5e
topology: v5e:2x2
jax: 0.10.0
libtpu: 0.0.40
codegen_flags: <defaults>
</compile_context>

<pallas_src>
import functools
import math

import jax
import jax.numpy as jnp
from jax.experimental import pallas as pl
from jax.experimental.pallas import tpu as pltpu


NUM_RELHEADS = 2
NUM_ABSHEADS = 2
NUM_HEADS = NUM_RELHEADS + NUM_ABSHEADS
POSITION_CLIP = 2
LN_EPS = 1e-5


# ----------------------------------------------------------------------------
# Tiling / spec helpers
# ----------------------------------------------------------------------------

def _pick_row_tile(m, target=256):
    """Largest row tile that is a multiple of 8, divides m, and (when possible)
    gives >= 2 grid steps so both v7x TensorCores get work."""
    if m % 8 != 0 or m <= 8:
        return m
    cap = min(target, m // 2)
    t = (cap // 8) * 8
    while t >= 8:
        if m % t == 0:
            return t
        t -= 8
    return m


def _bcast_spec(shape):
    zeros = (0,) * len(shape)
    return pl.BlockSpec(shape, lambda b, _z=zeros: _z)


def _batch_spec(shape):
    zeros = (0,) * (len(shape) - 1)
    return pl.BlockSpec(shape, lambda b, _z=zeros: (b,) + _z)


_CPARAMS = pltpu.CompilerParams(
    dimension_semantics=("parallel",),
    vmem_limit_bytes=32 * 1024 * 1024,   # explicit budget; safe on v5e/v6e/v7x
)


# ----------------------------------------------------------------------------
# Pallas kernels
# ----------------------------------------------------------------------------

def _block_kernel(h_ref, abs_ref, idx_ref, mask_ref, reltbl_ref, u_ref,
                  ln1g_ref, ln1b_ref, wqkv_ref, bqkv_ref, wabs_ref,
                  wo_ref, bo_ref, ln2g_ref, ln2b_ref,
                  w1_ref, b1_ref, w2_ref, b2_ref,
                  o_ref, *, nheads, nrel, dh, cmax, scale, eps):
    """One full transformer block for a single batch element (all in VMEM)."""
    x = h_ref[0]                                    # (T, H) f32 residual input
    T, H = x.shape

    # ---- LN1 + packed QKV projection (+ absolute-embedding Q/K correction) --
    mu = jnp.mean(x, axis=-1, keepdims=True)
    var = jnp.mean(jnp.square(x - mu), axis=-1, keepdims=True)
    xn = (x - mu) * jax.lax.rsqrt(var + eps) * ln1g_ref[...] + ln1b_ref[...]
    qkv = jnp.dot(xn.astype(jnp.bfloat16), wqkv_ref[...],
                  preferred_element_type=jnp.float32)
    qkv = qkv + jnp.dot(abs_ref[0].astype(jnp.bfloat16), wabs_ref[...],
                        preferred_element_type=jnp.float32)
    qkv = qkv + bqkv_ref[...]                       # (T, 3H) f32

    mask = mask_ref[0]                              # (1, T): 0 / -1e9 key mask
    u_all = u_ref[...]                              # (nrel, dh)
    idx_all = idx_ref[...]                          # (nrel, T, T) int32
    reltbl_all = reltbl_ref[...]                    # (nrel, dh, cmax)

    heads = []
    for hh in range(nheads):                        # static unrolled (4 heads)
        lo = hh * dh
        qh = qkv[:, lo:lo + dh]
        kh = qkv[:, H + lo:H + lo + dh]
        vh = qkv[:, 2 * H + lo:2 * H + lo + dh]
        s = jax.lax.dot_general(qh.astype(jnp.bfloat16), kh.astype(jnp.bfloat16),
                                (((1,), (1,)), ((), ())),
                                preferred_element_type=jnp.float32)     # (T,T)
        if hh < nrel:
            # Transformer-XL style relative term: (q + u) . table[clipped diff].
            # The per-(q,k) gather is realized as a one-hot select built from
            # the int32 clipped-diff indices (no dynamic gather in Mosaic).
            qu = (qh + u_all[hh:hh + 1, :]).astype(jnp.bfloat16)        # (T,dh)
            cols = jnp.dot(qu, reltbl_all[hh].astype(jnp.bfloat16),
                           preferred_element_type=jnp.float32)          # (T,C)
            onehot = (idx_all[hh][:, :, None] ==
                      jax.lax.broadcasted_iota(jnp.int32, (T, T, cmax), 2))
            relb = jnp.sum(jnp.where(onehot, cols[:, None, :], 0.0), axis=-1)
            s = s + relb
        s = s * scale + mask                         # mask broadcasts over keys
        s = s - jnp.max(s, axis=-1, keepdims=True)
        p = jnp.exp(s)
        l = jnp.sum(p, axis=-1, keepdims=True)
        oh = jnp.dot(p.astype(jnp.bfloat16), vh.astype(jnp.bfloat16),
                     preferred_element_type=jnp.float32)
        heads.append(oh / l)                         # exact softmax divide

    attn = jnp.concatenate(heads, axis=-1)           # (T, H), heads on lanes

    # ---- head-merged output projection + residual (single (T,H)@(H,H)) ----
    h1 = x + jnp.dot(attn.astype(jnp.bfloat16), wo_ref[...],
                     preferred_element_type=jnp.float32) + bo_ref[...]

    # ---- FFN: LN2 + W1 + GELU, then W2 + residual ----
    mu2 = jnp.mean(h1, axis=-1, keepdims=True)
    var2 = jnp.mean(jnp.square(h1 - mu2), axis=-1, keepdims=True)
    xn2 = (h1 - mu2) * jax.lax.rsqrt(var2 + eps) * ln2g_ref[...] + ln2b_ref[...]
    f = jnp.dot(xn2.astype(jnp.bfloat16), w1_ref[...],
                preferred_element_type=jnp.float32) + b1_ref[...]
    # TODO(synk): PyTorch nn.GELU default is exact erf; tanh approx kept (EUP path).
    f = jax.nn.gelu(f, approximate=True)
    h2 = h1 + jnp.dot(f.astype(jnp.bfloat16), w2_ref[...],
                      preferred_element_type=jnp.float32) + b2_ref[...]
    o_ref[0] = h2


def _linear_kernel(x_ref, w_ref, b_ref, o_ref):
    o_ref[...] = jnp.dot(x_ref[...].astype(jnp.bfloat16), w_ref[...],
                         preferred_element_type=jnp.float32) + b_ref[...]


# ----------------------------------------------------------------------------
# Pallas wrappers
# ----------------------------------------------------------------------------

def pallas_transformer_block(blk, h, abs_cat, idx, mask_pen, rel_tbl):
    B, T, H = h.shape
    H3 = blk["w_qkv"].shape[1]
    F = blk["w1"].shape[1]
    nrel, dh, cmax = rel_tbl.shape
    nheads = H // dh
    scale = 1.0 / math.sqrt(dh)
    kern = functools.partial(_block_kernel, nheads=nheads, nrel=nrel, dh=dh,
                             cmax=cmax, scale=scale, eps=LN_EPS)
    in_specs = [
        _batch_spec((1, T, H)),          # h (residual input)
        _batch_spec((1, T, 2 * H)),      # concatenated absolute embeddings
        _batch_spec((nrel, T, T)),       # clipped-diff indices (time, pos)
        _batch_spec((1, 1, T)),          # additive key-mask penalty
        _bcast_spec((nrel, dh, cmax)),   # per-head relative tables (pre-transposed)
        _bcast_spec((nrel, dh)),         # rel_position_bias u
        _bcast_spec((1, H)), _bcast_spec((1, H)),          # ln1 gamma, beta
        _bcast_spec((H, H3)), _bcast_spec((1, H3)),        # w_qkv, b_qkv
        _bcast_spec((2 * H, H3)),                          # w_abs
        _bcast_spec((H, H)), _bcast_spec((1, H)),          # wo, bo
        _bcast_spec((1, H)), _bcast_spec((1, H)),          # ln2 gamma, beta
        _bcast_spec((H, F)), _bcast_spec((1, F)),          # w1, b1
        _bcast_spec((F, H)), _bcast_spec((1, H)),          # w2, b2
    ]
    return pl.pallas_call(
        kern,
        out_shape=jax.ShapeDtypeStruct((B, T, H), jnp.float32),
        grid=(B,),
        in_specs=in_specs,
        out_specs=_batch_spec((1, T, H)),
        compiler_params=_CPARAMS,
    )(h, abs_cat, idx, mask_pen, rel_tbl, blk["u"],
      blk["ln1_g"], blk["ln1_b"], blk["w_qkv"], blk["b_qkv"], blk["w_abs"],
      blk["wo"], blk["bo"], blk["ln2_g"], blk["ln2_b"],
      blk["w1"], blk["b1"], blk["w2"], blk["b2"])


def pallas_linear(x2d, w, b):
    """Lane-dense classifier projection (weights pre-padded to 128 lanes)."""
    M, K = x2d.shape
    N = w.shape[1]
    tm = _pick_row_tile(M)
    return pl.pallas_call(
        _linear_kernel,
        out_shape=jax.ShapeDtypeStruct((M, N), jnp.float32),
        grid=(M // tm,),
        in_specs=[
            pl.BlockSpec((tm, K), lambda i: (i, 0)),
            pl.BlockSpec((K, N), lambda i: (0, 0)),
            pl.BlockSpec((1, N), lambda i: (0, 0)),
        ],
        out_specs=pl.BlockSpec((tm, N), lambda i: (i, 0)),
        compiler_params=_CPARAMS,
    )(x2d, w, b)


# ----------------------------------------------------------------------------
# Parameters (deterministic synthetic init, std=0.02 like the PyTorch module)
# ----------------------------------------------------------------------------

class Args:
    num_items = 20
    num_time_items = 10
    clip_time = 4
    num_blocks = 2
    dropout = 0.1        # inactive (eval mode)
    hidden_units = 32
    maxlen = 8
    device_idx = "0"


def init_params(args, key):
    H = args.hidden_units
    vocab = args.num_items + 2
    tvocab = args.num_time_items + 1
    d_ff = 4 * H
    dh = H // NUM_HEADS

    keys = iter(jax.random.split(key, 64))

    def nrm(shape):
        return 0.02 * jax.random.normal(next(keys), shape, jnp.float32)

    params = {
        "item_emb": nrm((vocab, H)),
        "rel_time_table": nrm((2 * args.clip_time + 1, H)),
        "rel_pos_table": nrm((2 * POSITION_CLIP + 1, H)),
        "abs_time_table": nrm((tvocab, H)),
        "abs_pos_table": nrm((args.maxlen, H)),
        "out_w": nrm((H, args.num_items + 1)),
        "out_b": jnp.zeros((args.num_items + 1,), jnp.float32),
        "blocks": [],
    }
    for _ in range(args.num_blocks):
        blk = {
            "ln1_g": jnp.ones((H,), jnp.float32),
            "ln1_b": jnp.zeros((H,), jnp.float32),
            "ln2_g": jnp.ones((H,), jnp.float32),
            "ln2_b": jnp.zeros((H,), jnp.float32),
            "Wq": nrm((H, H)), "bq": jnp.zeros((H,), jnp.float32),
            "Wk": nrm((H, H)), "bk": jnp.zeros((H,), jnp.float32),
            "Wv": nrm((H, H)), "bv": jnp.zeros((H,), jnp.float32),
            "Wo": nrm((H, H)), "bo": jnp.zeros((H,), jnp.float32),
            "rel_position_bias": nrm((NUM_RELHEADS, dh)),
            "W1": nrm((H, d_ff)), "b1": jnp.zeros((d_ff,), jnp.float32),
            "W2": nrm((d_ff, H)), "b2": jnp.zeros((H,), jnp.float32),
        }
        params["blocks"].append(blk)
    return params


def _build_abs_weight(Wq, Wk, H, dh):
    """(2H, 3H) weight mapping [abs_t | abs_p] to the Q/K slices of abs heads."""
    w = jnp.zeros((2 * H, 3 * H), jnp.float32)
    for a in range(NUM_ABSHEADS):
        head = NUM_RELHEADS + a
        lo, hi = head * dh, (head + 1) * dh
        w = w.at[a * H:(a + 1) * H, lo:hi].set(Wq[:, lo:hi])
        w = w.at[a * H:(a + 1) * H, H + lo:H + hi].set(Wk[:, lo:hi])
    return w.astype(jnp.bfloat16)


def prepare_params(params, args):
    """One-time weight packing hoisted out of the jitted forward."""
    H = args.hidden_units
    dh = H // NUM_HEADS
    cmax = max(2 * args.clip_time + 1, 2 * POSITION_CLIP + 1)

    def slice_pad_t(tbl, hh):
        sl = tbl[:, hh * dh:(hh + 1) * dh]                       # (C, dh)
        sl = jnp.pad(sl, ((0, cmax - sl.shape[0]), (0, 0)))      # pad rows to Cmax
        return sl.T                                              # (dh, Cmax)

    rel_tbl = jnp.stack([slice_pad_t(params["rel_time_table"], 0),
                         slice_pad_t(params["rel_pos_table"], 1)], axis=0)

    n_out = args.num_items + 1
    n_pad = ((n_out + 127) // 128) * 128
    out_w = jnp.zeros((H, n_pad), jnp.float32).at[:, :n_out].set(params["out_w"])
    out_b = jnp.zeros((1, n_pad), jnp.float32).at[:, :n_out].set(
        params["out_b"][None, :])

    prep = {
        "item_emb": params["item_emb"],
        "abs_time_table": params["abs_time_table"],
        "abs_pos_table": params["abs_pos_table"],
        "rel_tbl": rel_tbl,
        "out_w": out_w.astype(jnp.bfloat16),
        "out_b": out_b,
        "blocks": [],
    }
    for p in params["blocks"]:
        blk = {
            "ln1_g": p["ln1_g"].reshape(1, H), "ln1_b": p["ln1_b"].reshape(1, H),
            "ln2_g": p["ln2_g"].reshape(1, H), "ln2_b": p["ln2_b"].reshape(1, H),
            "w_qkv": jnp.concatenate([p["Wq"], p["Wk"], p["Wv"]],
                                     axis=1).astype(jnp.bfloat16),
            "b_qkv": jnp.concatenate([p["bq"], p["bk"], p["bv"]])[None, :],
            "w_abs": _build_abs_weight(p["Wq"], p["Wk"], H, dh),
            "wo": p["Wo"].astype(jnp.bfloat16), "bo": p["bo"][None, :],
            "u": p["rel_position_bias"],
            "w1": p["W1"].astype(jnp.bfloat16), "b1": p["b1"][None, :],
            "w2": p["W2"].astype(jnp.bfloat16), "b2": p["b2"][None, :],
        }
        prep["blocks"].append(blk)
    return prep


# ----------------------------------------------------------------------------
# Forward pass
# ----------------------------------------------------------------------------

def encoder_forward(prep, x, time_x, args):
    B, T = x.shape
    H = args.hidden_units

    # Additive key-mask penalty (B,1,T); applied after scaling like the original
    # where(mask, scores, -1e9) (difference only on fully-padded rows).
    mask_pen = jnp.where((x > 0)[:, None, :], 0.0, -1e9).astype(jnp.float32)

    # item embedding (+ dropout no-op, eval semantics)
    h = jnp.take(prep["item_emb"], x, axis=0)                        # (B,T,H)

    # clipped-difference index matrices (batch-major stack of [time, pos] heads)
    tdiff = jnp.clip(time_x[:, :, None] - time_x[:, None, :],
                     -args.clip_time, args.clip_time) + args.clip_time
    pos = jnp.arange(T)
    pdiff = jnp.clip(pos[:, None] - pos[None, :],
                     -POSITION_CLIP, POSITION_CLIP) + POSITION_CLIP
    idx = jnp.stack(
        [tdiff.astype(jnp.int32),
         jnp.broadcast_to(pdiff[None], (B, T, T)).astype(jnp.int32)],
        axis=1).reshape(B * NUM_RELHEADS, T, T)

    # absolute embeddings, concatenated once for the fused abs Q/K correction
    abs_t = jnp.take(prep["abs_time_table"], time_x, axis=0)         # (B,T,H)
    abs_p = jnp.broadcast_to(prep["abs_pos_table"][None, :T], (B, T, H))
    abs_cat = jnp.concatenate([abs_t, abs_p], axis=-1)               # (B,T,2H)

    for blk in prep["blocks"]:
        h = pallas_transformer_block(blk, h, abs_cat, idx, mask_pen,
                                     prep["rel_tbl"])

    # lane-dense (128-padded) classifier projection, sliced back to n_out
    n_out = args.num_items + 1
    pred = pallas_linear(h.reshape(B * T, H), prep["out_w"], prep["out_b"])
    pred = pred[:, :n_out].reshape(B, T, n_out)
    return pred, h


# ----------------------------------------------------------------------------
# Main
# ----------------------------------------------------------------------------

if __name__ == "__main__":
    args = Args()
    key = jax.random.PRNGKey(0)
    kp, kx, kt = jax.random.split(key, 3)

    params = init_params(args, kp)
    prep = prepare_params(params, args)        # weight packing hoisted out of jit

    B, T = 2, args.maxlen
    x = jax.random.randint(kx, (B, T), 0, args.num_items + 2, dtype=jnp.int32)
    time_x = jax.random.randint(kt, (B, T), 0, args.num_time_items + 1,
                                dtype=jnp.int32)

    fwd = jax.jit(functools.partial(encoder_forward, args=args))
    pred, hidden = fwd(prep, x, time_x)
    jax.block_until_ready(pred)
    jax.block_until_ready(hidden)

    assert pred.shape == (B, T, args.num_items + 1)
    assert hidden.shape == (B, T, args.hidden_units)
    print("KERNEL_OK")
</pallas_src>

<mosaic_0001>
module attributes {stable_mosaic.version = 11 : i64} {
  func.func @_linear_kernel(%arg0: i32, %arg1: memref<8x32xf32, #tpu.memory_space<vmem>>, %arg2: memref<32x128xbf16, #tpu.memory_space<vmem>>, %arg3: memref<1x128xf32, #tpu.memory_space<vmem>>, %arg4: memref<8x128xf32, #tpu.memory_space<vmem>>) attributes {dimension_semantics = [#tpu.dimension_semantics<parallel>], iteration_bounds = array<i64: 2>, scalar_prefetch = 0 : i64, scratch_operands = 0 : i64, tpu.core_type = #tpu.core_type<tc>, window_params = [{transform_indices = @transform_0, window_bounds = array<i64: 8, 32>}, {pipeline_mode = #tpu.pipeline_mode<synchronous>, transform_indices = @transform_1, window_bounds = array<i64: 32, 128>}, {pipeline_mode = #tpu.pipeline_mode<synchronous>, transform_indices = @transform_2, window_bounds = array<i64: 1, 128>}, {transform_indices = @transform_3, window_bounds = array<i64: 8, 128>}]} {
    %c0 = arith.constant 0 : index
    %c0_0 = arith.constant 0 : index
    %0 = vector.load %arg1[%c0, %c0_0] : memref<8x32xf32, #tpu.memory_space<vmem>>, vector<8x32xf32>
    %1 = arith.truncf %0 : vector<8x32xf32> to vector<8x32xbf16>
    %c0_1 = arith.constant 0 : index
    %c0_2 = arith.constant 0 : index
    %2 = vector.load %arg2[%c0_1, %c0_2] : memref<32x128xbf16, #tpu.memory_space<vmem>>, vector<32x128xbf16>
    %cst = arith.constant dense<0.000000e+00> : vector<8x128xf32>
    %3 = tpu.matmul %1, %2, %cst {dimension_numbers = #tpu.dot_dimension_numbers<[1], [0], [0], [1], [0, 0, 1, 1], [], []>} : vector<8x32xbf16>, vector<32x128xbf16>, vector<8x128xf32> -> vector<8x128xf32>
    %c0_3 = arith.constant 0 : index
    %c0_4 = arith.constant 0 : index
    %4 = vector.load %arg3[%c0_3, %c0_4] : memref<1x128xf32, #tpu.memory_space<vmem>>, vector<1x128xf32>
    %5 = vector.broadcast %4 : vector<1x128xf32> to vector<8x128xf32>
    %6 = arith.addf %3, %5 : vector<8x128xf32>
    %c0_5 = arith.constant 0 : index
    %c0_6 = arith.constant 0 : index
    %7 = vector.load %arg4[%c0_5, %c0_6] : memref<8x128xf32, #tpu.memory_space<vmem>>, vector<8x128xf32>
    tpu.vector_store %arg4[%c0_5, %c0_6], %6 {strides = array<i32>} : memref<8x128xf32, #tpu.memory_space<vmem>>, vector<8x128xf32>,
    return
  }
  func.func @transform_0(%arg0: i32) -> (i32, i32) {
    %c0_i32 = arith.constant 0 : i32
    %c0_i32_0 = arith.constant 0 : i32
    return %arg0, %c0_i32 : i32, i32
  }
  func.func @transform_1(%arg0: i32) -> (i32, i32) {
    %c0_i32 = arith.constant 0 : i32
    %c0_i32_0 = arith.constant 0 : i32
    %c0_i32_1 = arith.constant 0 : i32
    return %c0_i32, %c0_i32_0 : i32, i32
  }
  func.func @transform_2(%arg0: i32) -> (i32, i32) {
    %c0_i32 = arith.constant 0 : i32
    %c0_i32_0 = arith.constant 0 : i32
    %c0_i32_1 = arith.constant 0 : i32
    return %c0_i32, %c0_i32_0 : i32, i32
  }
  func.func @transform_3(%arg0: i32) -> (i32, i32) {
    %c0_i32 = arith.constant 0 : i32
    %c0_i32_0 = arith.constant 0 : i32
    return %arg0, %c0_i32 : i32, i32
  }
}

module attributes {stable_mosaic.version = 11 : i64} {
  func.func @_block_kernel(%arg0: i32, %arg1: memref<1x8x32xf32, #tpu.memory_space<vmem>>, %arg2: memref<1x8x64xf32, #tpu.memory_space<vmem>>, %arg3: memref<2x8x8xi32, #tpu.memory_space<vmem>>, %arg4: memref<1x1x8xf32, #tpu.memory_space<vmem>>, %arg5: memref<2x8x9xf32, #tpu.memory_space<vmem>>, %arg6: memref<2x8xf32, #tpu.memory_space<vmem>>, %arg7: memref<1x32xf32, #tpu.memory_space<vmem>>, %arg8: memref<1x32xf32, #tpu.memory_space<vmem>>, %arg9: memref<32x96xbf16, #tpu.memory_space<vmem>>, %arg10: memref<1x96xf32, #tpu.memory_space<vmem>>, %arg11: memref<64x96xbf16, #tpu.memory_space<vmem>>, %arg12: memref<32x32xbf16, #tpu.memory_space<vmem>>, %arg13: memref<1x32xf32, #tpu.memory_space<vmem>>, %arg14: memref<1x32xf32, #tpu.memory_space<vmem>>, %arg15: memref<1x32xf32, #tpu.memory_space<vmem>>, %arg16: memref<32x128xbf16, #tpu.memory_space<vmem>>, %arg17: memref<1x128xf32, #tpu.memory_space<vmem>>, %arg18: memref<128x32xbf16, #tpu.memory_space<vmem>>, %arg19: memref<1x32xf32, #tpu.memory_space<vmem>>, %arg20: memref<1x8x32xf32, #tpu.memory_space<vmem>>) attributes {dimension_semantics = [#tpu.dimension_semantics<parallel>], iteration_bounds = array<i64: 2>, scalar_prefetch = 0 : i64, scratch_operands = 0 : i64, tpu.core_type = #tpu.core_type<tc>, window_params = [{transform_indices = @transform_0, window_bounds = array<i64: 1, 8, 32>}, {transform_indices = @transform_1, window_bounds = array<i64: 1, 8, 64>}, {transform_indices = @transform_2, window_bounds = array<i64: 2, 8, 8>}, {transform_indices = @transform_3, window_bounds = array<i64: 1, 1, 8>}, {pipeline_mode = #tpu.pipeline_mode<synchronous>, transform_indices = @transform_4, window_bounds = array<i64: 2, 8, 9>}, {pipeline_mode = #tpu.pipeline_mode<synchronous>, transform_indices = @transform_5, window_bounds = array<i64: 2, 8>}, {pipeline_mode = #tpu.pipeline_mode<synchronous>, transform_indices = @transform_6, window_bounds = array<i64: 1, 32>}, {pipeline_mode = #tpu.pipeline_mode<synchronous>, transform_indices = @transform_7, window_bounds = array<i64: 1, 32>}, {pipeline_mode = #tpu.pipeline_mode<synchronous>, transform_indices = @transform_8, window_bounds = array<i64: 32, 96>}, {pipeline_mode = #tpu.pipeline_mode<synchronous>, transform_indices = @transform_9, window_bounds = array<i64: 1, 96>}, {pipeline_mode = #tpu.pipeline_mode<synchronous>, transform_indices = @transform_10, window_bounds = array<i64: 64, 96>}, {pipeline_mode = #tpu.pipeline_mode<synchronous>, transform_indices = @transform_11, window_bounds = array<i64: 32, 32>}, {pipeline_mode = #tpu.pipeline_mode<synchronous>, transform_indices = @transform_12, window_bounds = array<i64: 1, 32>}, {pipeline_mode = #tpu.pipeline_mode<synchronous>, transform_indices = @transform_13, window_bounds = array<i64: 1, 32>}, {pipeline_mode = #tpu.pipeline_mode<synchronous>, transform_indices = @transform_14, window_bounds = array<i64: 1, 32>}, {pipeline_mode = #tpu.pipeline_mode<synchronous>, transform_indices = @transform_15, window_bounds = array<i64: 32, 128>}, {pipeline_mode = #tpu.pipeline_mode<synchronous>, transform_indices = @transform_16, window_bounds = array<i64: 1, 128>}, {pipeline_mode = #tpu.pipeline_mode<synchronous>, transform_indices = @transform_17, window_bounds = array<i64: 128, 32>}, {pipeline_mode = #tpu.pipeline_mode<synchronous>, transform_indices = @transform_18, window_bounds = array<i64: 1, 32>}, {transform_indices = @transform_19, window_bounds = array<i64: 1, 8, 32>}]} {
    %c0 = arith.constant 0 : index
    %c0_0 = arith.constant 0 : index
    %c0_1 = arith.constant 0 : index
    %0 = vector.load %arg1[%c0, %c0_0, %c0_1] : memref<1x8x32xf32, #tpu.memory_space<vmem>>, vector<1x8x32xf32>
    %1 = vector.shape_cast %0 : vector<1x8x32xf32> to vector<8x32xf32>
    %cst = arith.constant dense<0.000000e+00> : vector<8xf32>
    %2 = vector.multi_reduction <add>, %1, %cst [1] : vector<8x32xf32> to vector<8xf32>
    %3 = vector.shape_cast %2 : vector<8xf32> to vector<8x1xf32>
    %cst_2 = arith.constant 3.200000e+01 : f32
    %4 = vector.broadcast %cst_2 : f32 to vector<8x1xf32>
    %5 = arith.divf %3, %4 : vector<8x1xf32>
    %6 = vector.broadcast %5 : vector<8x1xf32> to vector<8x32xf32>
    %7 = arith.subf %1, %6 : vector<8x32xf32>
    %8 = arith.mulf %7, %7 : vector<8x32xf32>
    %cst_3 = arith.constant dense<0.000000e+00> : vector<8xf32>
    %9 = vector.multi_reduction <add>, %8, %cst_3 [1] : vector<8x32xf32> to vector<8xf32>
    %10 = vector.shape_cast %9 : vector<8xf32> to vector<8x1xf32>
    %cst_4 = arith.constant 3.200000e+01 : f32
    %11 = vector.broadcast %cst_4 : f32 to vector<8x1xf32>
    %12 = arith.divf %10, %11 : vector<8x1xf32>
    %13 = vector.broadcast %5 : vector<8x1xf32> to vector<8x32xf32>
    %14 = arith.subf %1, %13 : vector<8x32xf32>
    %cst_5 = arith.constant 9.99999974E-6 : f32
    %15 = vector.broadcast %cst_5 : f32 to vector<8x1xf32>
    %16 = arith.addf %12, %15 : vector<8x1xf32>
    %17 = math.rsqrt %16 : vector<8x1xf32>
    %18 = vector.broadcast %17 : vector<8x1xf32> to vector<8x32xf32>
    %19 = arith.mulf %14, %18 : vector<8x32xf32>
    %c0_6 = arith.constant 0 : index
    %c0_7 = arith.constant 0 : index
    %20 = vector.load %arg7[%c0_6, %c0_7] : memref<1x32xf32, #tpu.memory_space<vmem>>, vector<1x32xf32>
    %21 = vector.broadcast %20 : vector<1x32xf32> to vector<8x32xf32>
    %22 = arith.mulf %19, %21 : vector<8x32xf32>
    %c0_8 = arith.constant 0 : index
    %c0_9 = arith.constant 0 : index
    %23 = vector.load %arg8[%c0_8, %c0_9] : memref<1x32xf32, #tpu.memory_space<vmem>>, vector<1x32xf32>
    %24 = vector.broadcast %23 : vector<1x32xf32> to vector<8x32xf32>
    %25 = arith.addf %22, %24 : vector<8x32xf32>
    %26 = arith.truncf %25 : vector<8x32xf32> to vector<8x32xbf16>
    %c0_10 = arith.constant 0 : index
    %c0_11 = arith.constant 0 : index
    %27 = vector.load %arg9[%c0_10, %c0_11] : memref<32x96xbf16, #tpu.memory_space<vmem>>, vector<32x96xbf16>
    %cst_12 = arith.constant dense<0.000000e+00> : vector<8x96xf32>
    %28 = tpu.matmul %26, %27, %cst_12 {dimension_numbers = #tpu.dot_dimension_numbers<[1], [0], [0], [1], [0, 0, 1, 1], [], []>} : vector<8x32xbf16>, vector<32x96xbf16>, vector<8x96xf32> -> vector<8x96xf32>
    %c0_13 = arith.constant 0 : index
    %c0_14 = arith.constant 0 : index
    %c0_15 = arith.constant 0 : index
    %29 = vector.load %arg2[%c0_13, %c0_14, %c0_15] : memref<1x8x64xf32, #tpu.memory_space<vmem>>, vector<1x8x64xf32>
    %30 = vector.shape_cast %29 : vector<1x8x64xf32> to vector<8x64xf32>
    %31 = arith.truncf %30 : vector<8x64xf32> to vector<8x64xbf16>
    %c0_16 = arith.constant 0 : index
    %c0_17 = arith.constant 0 : index
    %32 = vector.load %arg11[%c0_16, %c0_17] : memref<64x96xbf16, #tpu.memory_space<vmem>>, vector<64x96xbf16>
    %cst_18 = arith.constant dense<0.000000e+00> : vector<8x96xf32>
    %33 = tpu.matmul %31, %32, %cst_18 {dimension_numbers = #tpu.dot_dimension_numbers<[1], [0], [0], [1], [0, 0, 1, 1], [], []>} : vector<8x64xbf16>, vector<64x96xbf16>, vector<8x96xf32> -> vector<8x96xf32>
    %34 = arith.addf %28, %33 : vector<8x96xf32>
    %c0_19 = arith.constant 0 : index
    %c0_20 = arith.constant 0 : index
    %35 = vector.load %arg10[%c0_19, %c0_20] : memref<1x96xf32, #tpu.memory_space<vmem>>, vector<1x96xf32>
    %36 = vector.broadcast %35 : vector<1x96xf32> to vector<8x96xf32>
    %37 = arith.addf %34, %36 : vector<8x96xf32>
    %c0_21 = arith.constant 0 : index
    %c0_22 = arith.constant 0 : index
    %c0_23 = arith.constant 0 : index
    %38 = vector.load %arg4[%c0_21, %c0_22, %c0_23] : memref<1x1x8xf32, #tpu.memory_space<vmem>>, vector<1x1x8xf32>
    %39 = vector.shape_cast %38 : vector<1x1x8xf32> to vector<1x8xf32>
    %c0_24 = arith.constant 0 : index
    %c0_25 = arith.constant 0 : index
    %40 = vector.load %arg6[%c0_24, %c0_25] : memref<2x8xf32, #tpu.memory_space<vmem>>, vector<2x8xf32>
    %c0_26 = arith.constant 0 : index
    %c0_27 = arith.constant 0 : index
    %c0_28 = arith.constant 0 : index
    %41 = vector.load %arg3[%c0_26, %c0_27, %c0_28] : memref<2x8x8xi32, #tpu.memory_space<vmem>>, vector<2x8x8xi32>
    %c0_29 = arith.constant 0 : index
    %c0_30 = arith.constant 0 : index
    %c0_31 = arith.constant 0 : index
    %42 = vector.load %arg5[%c0_29, %c0_30, %c0_31] : memref<2x8x9xf32, #tpu.memory_space<vmem>>, vector<2x8x9xf32>
    %43 = vector.extract_strided_slice %37 {offsets = [0, 0], sizes = [8, 8], strides = [1, 1]} : vector<8x96xf32> to vector<8x8xf32>
    %44 = vector.extract_strided_slice %37 {offsets = [0, 32], sizes = [8, 8], strides = [1, 1]} : vector<8x96xf32> to vector<8x8xf32>
    %45 = vector.extract_strided_slice %37 {offsets = [0, 64], sizes = [8, 8], strides = [1, 1]} : vector<8x96xf32> to vector<8x8xf32>
    %46 = arith.truncf %43 : vector<8x8xf32> to vector<8x8xbf16>
    %47 = arith.truncf %44 : vector<8x8xf32> to vector<8x8xbf16>
    %cst_32 = arith.constant dense<0.000000e+00> : vector<8x8xf32>
    %48 = tpu.matmul %46, %47, %cst_32 {dimension_numbers = #tpu.dot_dimension_numbers<[1], [1], [0], [0], [0, 0, 1, 0], [], []>} : vector<8x8xbf16>, vector<8x8xbf16>, vector<8x8xf32> -> vector<8x8xf32>
    %49 = vector.extract_strided_slice %40 {offsets = [0, 0], sizes = [1, 8], strides = [1, 1]} : vector<2x8xf32> to vector<1x8xf32>
    %50 = vector.broadcast %49 : vector<1x8xf32> to vector<8x8xf32>
    %51 = arith.addf %43, %50 : vector<8x8xf32>
    %52 = arith.truncf %51 : vector<8x8xf32> to vector<8x8xbf16>
    %53 = vector.extract_strided_slice %42 {offsets = [0, 0, 0], sizes = [1, 8, 9], strides = [1, 1, 1]} : vector<2x8x9xf32> to vector<1x8x9xf32>
    %54 = vector.shape_cast %53 : vector<1x8x9xf32> to vector<8x9xf32>
    %55 = arith.truncf %54 : vector<8x9xf32> to vector<8x9xbf16>
    %cst_33 = arith.constant dense<0.000000e+00> : vector<8x9xf32>
    %56 = tpu.matmul %52, %55, %cst_33 {dimension_numbers = #tpu.dot_dimension_numbers<[1], [0], [0], [1], [0, 0, 1, 1], [], []>} : vector<8x8xbf16>, vector<8x9xbf16>, vector<8x9xf32> -> vector<8x9xf32>
    %57 = vector.extract_strided_slice %41 {offsets = [0, 0, 0], sizes = [1, 8, 8], strides = [1, 1, 1]} : vector<2x8x8xi32> to vector<1x8x8xi32>
    %58 = vector.shape_cast %57 : vector<1x8x8xi32> to vector<8x8xi32>
    %59 = vector.shape_cast %58 : vector<8x8xi32> to vector<8x8x1xi32>
    %60 = tpu.iota {dimensions = array<i32: 2>} : vector<8x8x9xi32>
    %61 = vector.broadcast %59 : vector<8x8x1xi32> to vector<8x8x9xi32>
    %62 = arith.cmpi eq, %61, %60 : vector<8x8x9xi32>
    %63 = vector.shape_cast %56 : vector<8x9xf32> to vector<8x1x9xf32>
    %cst_34 = arith.constant 0.000000e+00 : f32
    %64 = vector.shape_cast %63 : vector<8x1x9xf32> to vector<8x1x9xf32>
    %65 = vector.broadcast %64 : vector<8x1x9xf32> to vector<8x8x9xf32>
    %66 = vector.broadcast %cst_34 : f32 to vector<8x8x9xf32>
    %67 = arith.select %62, %65, %66 : vector<8x8x9xi1>, vector<8x8x9xf32>
    %cst_35 = arith.constant dense<0.000000e+00> : vector<8x8xf32>
    %68 = vector.multi_reduction <add>, %67, %cst_35 [2] : vector<8x8x9xf32> to vector<8x8xf32>
    %69 = arith.addf %48, %68 : vector<8x8xf32>
    %cst_36 = arith.constant 0.353553385 : f32
    %70 = vector.broadcast %cst_36 : f32 to vector<8x8xf32>
    %71 = arith.mulf %69, %70 : vector<8x8xf32>
    %72 = vector.broadcast %39 : vector<1x8xf32> to vector<8x8xf32>
    %73 = arith.addf %71, %72 : vector<8x8xf32>
    %cst_37 = arith.constant dense<0xFF800000> : vector<8xf32>
    %74 = vector.multi_reduction <maximumf>, %73, %cst_37 [1] : vector<8x8xf32> to vector<8xf32>
    %75 = vector.shape_cast %74 : vector<8xf32> to vector<8x1xf32>
    %76 = vector.broadcast %75 : vector<8x1xf32> to vector<8x8xf32>
    %77 = arith.subf %73, %76 : vector<8x8xf32>
    %78 = math.exp %77 : vector<8x8xf32>
    %cst_38 = arith.constant dense<0.000000e+00> : vector<8xf32>
    %79 = vector.multi_reduction <add>, %78, %cst_38 [1] : vector<8x8xf32> to vector<8xf32>
    %80 = vector.shape_cast %79 : vector<8xf32> to vector<8x1xf32>
    %81 = arith.truncf %78 : vector<8x8xf32> to vector<8x8xbf16>
    %82 = arith.truncf %45 : vector<8x8xf32> to vector<8x8xbf16>
    %cst_39 = arith.constant dense<0.000000e+00> : vector<8x8xf32>
    %83 = tpu.matmul %81, %82, %cst_39 {dimension_numbers = #tpu.dot_dimension_numbers<[1], [0], [0], [1], [0, 0, 1, 1], [], []>} : vector<8x8xbf16>, vector<8x8xbf16>, vector<8x8xf32> -> vector<8x8xf32>
    %84 = vector.broadcast %80 : vector<8x1xf32> to vector<8x8xf32>
    %85 = arith.divf %83, %84 : vector<8x8xf32>
    %86 = vector.extract_strided_slice %37 {offsets = [0, 8], sizes = [8, 8], strides = [1, 1]} : vector<8x96xf32> to vector<8x8xf32>
    %87 = vector.extract_strided_slice %37 {offsets = [0, 40], sizes = [8, 8], strides = [1, 1]} : vector<8x96xf32> to vector<8x8xf32>
    %88 = vector.extract_strided_slice %37 {offsets = [0, 72], sizes = [8, 8], strides = [1, 1]} : vector<8x96xf32> to vector<8x8xf32>
    %89 = arith.truncf %86 : vector<8x8xf32> to vector<8x8xbf16>
    %90 = arith.truncf %87 : vector<8x8xf32> to vector<8x8xbf16>
    %cst_40 = arith.constant dense<0.000000e+00> : vector<8x8xf32>
    %91 = tpu.matmul %89, %90, %cst_40 {dimension_numbers = #tpu.dot_dimension_numbers<[1], [1], [0], [0], [0, 0, 1, 0], [], []>} : vector<8x8xbf16>, vector<8x8xbf16>, vector<8x8xf32> -> vector<8x8xf32>
    %92 = vector.extract_strided_slice %40 {offsets = [1, 0], sizes = [1, 8], strides = [1, 1]} : vector<2x8xf32> to vector<1x8xf32>
    %93 = vector.broadcast %92 : vector<1x8xf32> to vector<8x8xf32>
    %94 = arith.addf %86, %93 : vector<8x8xf32>
    %95 = arith.truncf %94 : vector<8x8xf32> to vector<8x8xbf16>
    %96 = vector.extract_strided_slice %42 {offsets = [1, 0, 0], sizes = [1, 8, 9], strides = [1, 1, 1]} : vector<2x8x9xf32> to vector<1x8x9xf32>
    %97 = vector.shape_cast %96 : vector<1x8x9xf32> to vector<8x9xf32>
    %98 = arith.truncf %97 : vector<8x9xf32> to vector<8x9xbf16>
    %cst_41 = arith.constant dense<0.000000e+00> : vector<8x9xf32>
    %99 = tpu.matmul %95, %98, %cst_41 {dimension_numbers = #tpu.dot_dimension_numbers<[1], [0], [0], [1], [0, 0, 1, 1], [], []>} : vector<8x8xbf16>, vector<8x9xbf16>, vector<8x9xf32> -> vector<8x9xf32>
    %100 = vector.extract_strided_slice %41 {offsets = [1, 0, 0], sizes = [1, 8, 8], strides = [1, 1, 1]} : vector<2x8x8xi32> to vector<1x8x8xi32>
    %101 = vector.shape_cast %100 : vector<1x8x8xi32> to vector<8x8xi32>
    %102 = vector.shape_cast %101 : vector<8x8xi32> to vector<8x8x1xi32>
    %103 = tpu.iota {dimensions = array<i32: 2>} : vector<8x8x9xi32>
    %104 = vector.broadcast %102 : vector<8x8x1xi32> to vector<8x8x9xi32>
    %105 = arith.cmpi eq, %104, %103 : vector<8x8x9xi32>
    %106 = vector.shape_cast %99 : vector<8x9xf32> to vector<8x1x9xf32>
    %cst_42 = arith.constant 0.000000e+00 : f32
    %107 = vector.shape_cast %106 : vector<8x1x9xf32> to vector<8x1x9xf32>
    %108 = vector.broadcast %107 : vector<8x1x9xf32> to vector<8x8x9xf32>
    %109 = vector.broadcast %cst_42 : f32 to vector<8x8x9xf32>
    %110 = arith.select %105, %108, %109 : vector<8x8x9xi1>, vector<8x8x9xf32>
    %cst_43 = arith.constant dense<0.000000e+00> : vector<8x8xf32>
    %111 = vector.multi_reduction <add>, %110, %cst_43 [2] : vector<8x8x9xf32> to vector<8x8xf32>
    %112 = arith.addf %91, %111 : vector<8x8xf32>
    %cst_44 = arith.constant 0.353553385 : f32
    %113 = vector.broadcast %cst_44 : f32 to vector<8x8xf32>
    %114 = arith.mulf %112, %113 : vector<8x8xf32>
    %115 = vector.broadcast %39 : vector<1x8xf32> to vector<8x8xf32>
    %116 = arith.addf %114, %115 : vector<8x8xf32>
    %cst_45 = arith.constant dense<0xFF800000> : vector<8xf32>
    %117 = vector.multi_reduction <maximumf>, %116, %cst_45 [1] : vector<8x8xf32> to vector<8xf32>
    %118 = vector.shape_cast %117 : vector<8xf32> to vector<8x1xf32>
    %119 = vector.broadcast %118 : vector<8x1xf32> to vector<8x8xf32>
    %120 = arith.subf %116, %119 : vector<8x8xf32>
    %121 = math.exp %120 : vector<8x8xf32>
    %cst_46 = arith.constant dense<0.000000e+00> : vector<8xf32>
    %122 = vector.multi_reduction <add>, %121, %cst_46 [1] : vector<8x8xf32> to vector<8xf32>
    %123 = vector.shape_cast %122 : vector<8xf32> to vector<8x1xf32>
    %124 = arith.truncf %121 : vector<8x8xf32> to vector<8x8xbf16>
    %125 = arith.truncf %88 : vector<8x8xf32> to vector<8x8xbf16>
    %cst_47 = arith.constant dense<0.000000e+00> : vector<8x8xf32>
    %126 = tpu.matmul %124, %125, %cst_47 {dimension_numbers = #tpu.dot_dimension_numbers<[1], [0], [0], [1], [0, 0, 1, 1], [], []>} : vector<8x8xbf16>, vector<8x8xbf16>, vector<8x8xf32> -> vector<8x8xf32>
    %127 = vector.broadcast %123 : vector<8x1xf32> to vector<8x8xf32>
    %128 = arith.divf %126, %127 : vector<8x8xf32>
    %129 = vector.extract_strided_slice %37 {offsets = [0, 16], sizes = [8, 8], strides = [1, 1]} : vector<8x96xf32> to vector<8x8xf32>
    %130 = vector.extract_strided_slice %37 {offsets = [0, 48], sizes = [8, 8], strides = [1, 1]} : vector<8x96xf32> to vector<8x8xf32>
    %131 = vector.extract_strided_slice %37 {offsets = [0, 80], sizes = [8, 8], strides = [1, 1]} : vector<8x96xf32> to vector<8x8xf32>
    %132 = arith.truncf %129 : vector<8x8xf32> to vector<8x8xbf16>
    %133 = arith.truncf %130 : vector<8x8xf32> to vector<8x8xbf16>
    %cst_48 = arith.constant dense<0.000000e+00> : vector<8x8xf32>
    %134 = tpu.matmul %132, %133, %cst_48 {dimension_numbers = #tpu.dot_dimension_numbers<[1], [1], [0], [0], [0, 0, 1, 0], [], []>} : vector<8x8xbf16>, vector<8x8xbf16>, vector<8x8xf32> -> vector<8x8xf32>
    %cst_49 = arith.constant 0.353553385 : f32
    %135 = vector.broadcast %cst_49 : f32 to vector<8x8xf32>
    %136 = arith.mulf %134, %135 : vector<8x8xf32>
    %137 = vector.broadcast %39 : vector<1x8xf32> to vector<8x8xf32>
    %138 = arith.addf %136, %137 : vector<8x8xf32>
    %cst_50 = arith.constant dense<0xFF800000> : vector<8xf32>
    %139 = vector.multi_reduction <maximumf>, %138, %cst_50 [1] : vector<8x8xf32> to vector<8xf32>
    %140 = vector.shape_cast %139 : vector<8xf32> to vector<8x1xf32>
    %141 = vector.broadcast %140 : vector<8x1xf32> to vector<8x8xf32>
    %142 = arith.subf %138, %141 : vector<8x8xf32>
    %143 = math.exp %142 : vector<8x8xf32>
    %cst_51 = arith.constant dense<0.000000e+00> : vector<8xf32>
    %144 = vector.multi_reduction <add>, %143, %cst_51 [1] : vector<8x8xf32> to vector<8xf32>
    %145 = vector.shape_cast %144 : vector<8xf32> to vector<8x1xf32>
    %146 = arith.truncf %143 : vector<8x8xf32> to vector<8x8xbf16>
    %147 = arith.truncf %131 : vector<8x8xf32> to vector<8x8xbf16>
    %cst_52 = arith.constant dense<0.000000e+00> : vector<8x8xf32>
    %148 = tpu.matmul %146, %147, %cst_52 {dimension_numbers = #tpu.dot_dimension_numbers<[1], [0], [0], [1], [0, 0, 1, 1], [], []>} : vector<8x8xbf16>, vector<8x8xbf16>, vector<8x8xf32> -> vector<8x8xf32>
    %149 = vector.broadcast %145 : vector<8x1xf32> to vector<8x8xf32>
    %150 = arith.divf %148, %149 : vector<8x8xf32>
    %151 = vector.extract_strided_slice %37 {offsets = [0, 24], sizes = [8, 8], strides = [1, 1]} : vector<8x96xf32> to vector<8x8xf32>
    %152 = vector.extract_strided_slice %37 {offsets = [0, 56], sizes = [8, 8], strides = [1, 1]} : vector<8x96xf32> to vector<8x8xf32>
    %153 = vector.extract_strided_slice %37 {offsets = [0, 88], sizes = [8, 8], strides = [1, 1]} : vector<8x96xf32> to vector<8x8xf32>
    %154 = arith.truncf %151 : vector<8x8xf32> to vector<8x8xbf16>
    %155 = arith.truncf %152 : vector<8x8xf32> to vector<8x8xbf16>
    %cst_53 = arith.constant dense<0.000000e+00> : vector<8x8xf32>
    %156 = tpu.matmul %154, %155, %cst_53 {dimension_numbers = #tpu.dot_dimension_numbers<[1], [1], [0], [0], [0, 0, 1, 0], [], []>} : vector<8x8xbf16>, vector<8x8xbf16>, vector<8x8xf32> -> vector<8x8xf32>
    %cst_54 = arith.constant 0.353553385 : f32
    %157 = vector.broadcast %cst_54 : f32 to vector<8x8xf32>
    %158 = arith.mulf %156, %157 : vector<8x8xf32>
    %159 = vector.broadcast %39 : vector<1x8xf32> to vector<8x8xf32>
    %160 = arith.addf %158, %159 : vector<8x8xf32>
    %cst_55 = arith.constant dense<0xFF800000> : vector<8xf32>
    %161 = vector.multi_reduction <maximumf>, %160, %cst_55 [1] : vector<8x8xf32> to vector<8xf32>
    %162 = vector.shape_cast %161 : vector<8xf32> to vector<8x1xf32>
    %163 = vector.broadcast %162 : vector<8x1xf32> to vector<8x8xf32>
    %164 = arith.subf %160, %163 : vector<8x8xf32>
    %165 = math.exp %164 : vector<8x8xf32>
    %cst_56 = arith.constant dense<0.000000e+00> : vector<8xf32>
    %166 = vector.multi_reduction <add>, %165, %cst_56 [1] : vector<8x8xf32> to vector<8xf32>
    %167 = vector.shape_cast %166 : vector<8xf32> to vector<8x1xf32>
    %168 = arith.truncf %165 : vector<8x8xf32> to vector<8x8xbf16>
    %169 = arith.truncf %153 : vector<8x8xf32> to vector<8x8xbf16>
    %cst_57 = arith.constant dense<0.000000e+00> : vector<8x8xf32>
    %170 = tpu.matmul %168, %169, %cst_57 {dimension_numbers = #tpu.dot_dimension_numbers<[1], [0], [0], [1], [0, 0, 1, 1], [], []>} : vector<8x8xbf16>, vector<8x8xbf16>, vector<8x8xf32> -> vector<8x8xf32>
    %171 = vector.broadcast %167 : vector<8x1xf32> to vector<8x8xf32>
    %172 = arith.divf %170, %171 : vector<8x8xf32>
    %173 = tpu.concatenate %85, %128, %150, %172 in 1 : vector<8x8xf32>, vector<8x8xf32>, vector<8x8xf32>, vector<8x8xf32> -> vector<8x32xf32>
    %174 = arith.truncf %173 : vector<8x32xf32> to vector<8x32xbf16>
    %c0_58 = arith.constant 0 : index
    %c0_59 = arith.constant 0 : index
    %175 = vector.load %arg12[%c0_58, %c0_59] : memref<32x32xbf16, #tpu.memory_space<vmem>>, vector<32x32xbf16>
    %cst_60 = arith.constant dense<0.000000e+00> : vector<8x32xf32>
    %176 = tpu.matmul %174, %175, %cst_60 {dimension_numbers = #tpu.dot_dimension_numbers<[1], [0], [0], [1], [0, 0, 1, 1], [], []>} : vector<8x32xbf16>, vector<32x32xbf16>, vector<8x32xf32> -> vector<8x32xf32>
    %177 = arith.addf %1, %176 : vector<8x32xf32>
    %c0_61 = arith.constant 0 : index
    %c0_62 = arith.constant 0 : index
    %178 = vector.load %arg13[%c0_61, %c0_62] : memref<1x32xf32, #tpu.memory_space<vmem>>, vector<1x32xf32>
    %179 = vector.broadcast %178 : vector<1x32xf32> to vector<8x32xf32>
    %180 = arith.addf %177, %179 : vector<8x32xf32>
    %cst_63 = arith.constant dense<0.000000e+00> : vector<8xf32>
    %181 = vector.multi_reduction <add>, %180, %cst_63 [1] : vector<8x32xf32> to vector<8xf32>
    %182 = vector.shape_cast %181 : vector<8xf32> to vector<8x1xf32>
    %cst_64 = arith.constant 3.200000e+01 : f32
    %183 = vector.broadcast %cst_64 : f32 to vector<8x1xf32>
    %184 = arith.divf %182, %183 : vector<8x1xf32>
    %185 = vector.broadcast %184 : vector<8x1xf32> to vector<8x32xf32>
    %186 = arith.subf %180, %185 : vector<8x32xf32>
    %187 = arith.mulf %186, %186 : vector<8x32xf32>
    %cst_65 = arith.constant dense<0.000000e+00> : vector<8xf32>
    %188 = vector.multi_reduction <add>, %187, %cst_65 [1] : vector<8x32xf32> to vector<8xf32>
    %189 = vector.shape_cast %188 : vector<8xf32> to vector<8x1xf32>
    %cst_66 = arith.constant 3.200000e+01 : f32
    %190 = vector.broadcast %cst_66 : f32 to vector<8x1xf32>
    %191 = arith.divf %189, %190 : vector<8x1xf32>
    %192 = vector.broadcast %184 : vector<8x1xf32> to vector<8x32xf32>
    %193 = arith.subf %180, %192 : vector<8x32xf32>
    %cst_67 = arith.constant 9.99999974E-6 : f32
    %194 = vector.broadcast %cst_67 : f32 to vector<8x1xf32>
    %195 = arith.addf %191, %194 : vector<8x1xf32>
    %196 = math.rsqrt %195 : vector<8x1xf32>
    %197 = vector.broadcast %196 : vector<8x1xf32> to vector<8x32xf32>
    %198 = arith.mulf %193, %197 : vector<8x32xf32>
    %c0_68 = arith.constant 0 : index
    %c0_69 = arith.constant 0 : index
    %199 = vector.load %arg14[%c0_68, %c0_69] : memref<1x32xf32, #tpu.memory_space<vmem>>, vector<1x32xf32>
    %200 = vector.broadcast %199 : vector<1x32xf32> to vector<8x32xf32>
    %201 = arith.mulf %198, %200 : vector<8x32xf32>
    %c0_70 = arith.constant 0 : index
    %c0_71 = arith.constant 0 : index
    %202 = vector.load %arg15[%c0_70, %c0_71] : memref<1x32xf32, #tpu.memory_space<vmem>>, vector<1x32xf32>
    %203 = vector.broadcast %202 : vector<1x32xf32> to vector<8x32xf32>
    %204 = arith.addf %201, %203 : vector<8x32xf32>
    %205 = arith.truncf %204 : vector<8x32xf32> to vector<8x32xbf16>
    %c0_72 = arith.constant 0 : index
    %c0_73 = arith.constant 0 : index
    %206 = vector.load %arg16[%c0_72, %c0_73] : memref<32x128xbf16, #tpu.memory_space<vmem>>, vector<32x128xbf16>
    %cst_74 = arith.constant dense<0.000000e+00> : vector<8x128xf32>
    %207 = tpu.matmul %205, %206, %cst_74 {dimension_numbers = #tpu.dot_dimension_numbers<[1], [0], [0], [1], [0, 0, 1, 1], [], []>} : vector<8x32xbf16>, vector<32x128xbf16>, vector<8x128xf32> -> vector<8x128xf32>
    %c0_75 = arith.constant 0 : index
    %c0_76 = arith.constant 0 : index
    %208 = vector.load %arg17[%c0_75, %c0_76] : memref<1x128xf32, #tpu.memory_space<vmem>>, vector<1x128xf32>
    %209 = vector.broadcast %208 : vector<1x128xf32> to vector<8x128xf32>
    %210 = arith.addf %207, %209 : vector<8x128xf32>
    %211 = arith.mulf %210, %210 : vector<8x128xf32>
    %212 = arith.mulf %210, %211 : vector<8x128xf32>
    %cst_77 = arith.constant 4.471500e-02 : f32
    %213 = vector.broadcast %cst_77 : f32 to vector<8x128xf32>
    %214 = arith.mulf %213, %212 : vector<8x128xf32>
    %215 = arith.addf %210, %214 : vector<8x128xf32>
    %cst_78 = arith.constant 0.797884583 : f32
    %216 = vector.broadcast %cst_78 : f32 to vector<8x128xf32>
    %217 = arith.mulf %216, %215 : vector<8x128xf32>
    %218 = math.tanh %217 : vector<8x128xf32>
    %cst_79 = arith.constant 1.000000e+00 : f32
    %219 = vector.broadcast %cst_79 : f32 to vector<8x128xf32>
    %220 = arith.addf %219, %218 : vector<8x128xf32>
    %cst_80 = arith.constant 5.000000e-01 : f32
    %221 = vector.broadcast %cst_80 : f32 to vector<8x128xf32>
    %222 = arith.mulf %221, %220 : vector<8x128xf32>
    %223 = arith.mulf %210, %222 : vector<8x128xf32>
    %224 = arith.truncf %223 : vector<8x128xf32> to vector<8x128xbf16>
    %c0_81 = arith.constant 0 : index
    %c0_82 = arith.constant 0 : index
    %225 = vector.load %arg18[%c0_81, %c0_82] : memref<128x32xbf16, #tpu.memory_space<vmem>>, vector<128x32xbf16>
    %cst_83 = arith.constant dense<0.000000e+00> : vector<8x32xf32>
    %226 = tpu.matmul %224, %225, %cst_83 {dimension_numbers = #tpu.dot_dimension_numbers<[1], [0], [0], [1], [0, 0, 1, 1], [], []>} : vector<8x128xbf16>, vector<128x32xbf16>, vector<8x32xf32> -> vector<8x32xf32>
    %227 = arith.addf %180, %226 : vector<8x32xf32>
    %c0_84 = arith.constant 0 : index
    %c0_85 = arith.constant 0 : index
    %228 = vector.load %arg19[%c0_84, %c0_85] : memref<1x32xf32, #tpu.memory_space<vmem>>, vector<1x32xf32>
    %229 = vector.broadcast %228 : vector<1x32xf32> to vector<8x32xf32>
    %230 = arith.addf %227, %229 : vector<8x32xf32>
    %c0_86 = arith.constant 0 : index
    %c0_87 = arith.constant 0 : index
    %c0_88 = arith.constant 0 : index
    %231 = vector.load %arg20[%c0_86, %c0_87, %c0_88] : memref<1x8x32xf32, #tpu.memory_space<vmem>>, vector<1x8x32xf32>
    %232 = vector.shape_cast %231 : vector<1x8x32xf32> to vector<8x32xf32>
    %233 = vector.shape_cast %230 : vector<8x32xf32> to vector<1x8x32xf32>
    tpu.vector_store %arg20[%c0_86, %c0_87, %c0_88], %233 {strides = array<i32>} : memref<1x8x32xf32, #tpu.memory_space<vmem>>, vector<1x8x32xf32>,
    return
  }
  func.func @transform_0(%arg0: i32) -> (i32, i32, i32) {
    %c0_i32 = arith.constant 0 : i32
    %c0_i32_0 = arith.constant 0 : i32
    %c0_i32_1 = arith.constant 0 : i32
    return %arg0, %c0_i32, %c0_i32_0 : i32, i32, i32
  }
  func.func @transform_1(%arg0: i32) -> (i32, i32, i32) {
    %c0_i32 = arith.constant 0 : i32
    %c0_i32_0 = arith.constant 0 : i32
    %c0_i32_1 = arith.constant 0 : i32
    return %arg0, %c0_i32, %c0_i32_0 : i32, i32, i32
  }
  func.func @transform_2(%arg0: i32) -> (i32, i32, i32) {
    %c0_i32 = arith.constant 0 : i32
    %c0_i32_0 = arith.constant 0 : i32
    %c0_i32_1 = arith.constant 0 : i32
    return %arg0, %c0_i32, %c0_i32_0 : i32, i32, i32
  }
  func.func @transform_3(%arg0: i32) -> (i32, i32, i32) {
    %c0_i32 = arith.constant 0 : i32
    %c0_i32_0 = arith.constant 0 : i32
    %c0_i32_1 = arith.constant 0 : i32
    return %arg0, %c0_i32, %c0_i32_0 : i32, i32, i32
  }
  func.func @transform_4(%arg0: i32) -> (i32, i32, i32) {
    %c0_i32 = arith.constant 0 : i32
    %c0_i32_0 = arith.constant 0 : i32
    %c0_i32_1 = arith.constant 0 : i32
    %c0_i32_2 = arith.constant 0 : i32
    return %c0_i32, %c0_i32_0, %c0_i32_1 : i32, i32, i32
  }
  func.func @transform_5(%arg0: i32) -> (i32, i32) {
    %c0_i32 = arith.constant 0 : i32
    %c0_i32_0 = arith.constant 0 : i32
    %c0_i32_1 = arith.constant 0 : i32
    return %c0_i32, %c0_i32_0 : i32, i32
  }
  func.func @transform_6(%arg0: i32) -> (i32, i32) {
    %c0_i32 = arith.constant 0 : i32
    %c0_i32_0 = arith.constant 0 : i32
    %c0_i32_1 = arith.constant 0 : i32
    return %c0_i32, %c0_i32_0 : i32, i32
  }
  func.func @transform_7(%arg0: i32) -> (i32, i32) {
    %c0_i32 = arith.constant 0 : i32
    %c0_i32_0 = arith.constant 0 : i32
    %c0_i32_1 = arith.constant 0 : i32
    return %c0_i32, %c0_i32_0 : i32, i32
  }
  func.func @transform_8(%arg0: i32) -> (i32, i32) {
    %c0_i32 = arith.constant 0 : i32
    %c0_i32_0 = arith.constant 0 : i32
    %c0_i32_1 = arith.constant 0 : i32
    return %c0_i32, %c0_i32_0 : i32, i32
  }
  func.func @transform_9(%arg0: i32) -> (i32, i32) {
    %c0_i32 = arith.constant 0 : i32
    %c0_i32_0 = arith.constant 0 : i32
    %c0_i32_1 = arith.constant 0 : i32
    return %c0_i32, %c0_i32_0 : i32, i32
  }
  func.func @transform_10(%arg0: i32) -> (i32, i32) {
    %c0_i32 = arith.constant 0 : i32
    %c0_i32_0 = arith.constant 0 : i32
    %c0_i32_1 = arith.constant 0 : i32
    return %c0_i32, %c0_i32_0 : i32, i32
  }
  func.func @transform_11(%arg0: i32) -> (i32, i32) {
    %c0_i32 = arith.constant 0 : i32
    %c0_i32_0 = arith.constant 0 : i32
    %c0_i32_1 = arith.constant 0 : i32
    return %c0_i32, %c0_i32_0 : i32, i32
  }
  func.func @transform_12(%arg0: i32) -> (i32, i32) {
    %c0_i32 = arith.constant 0 : i32
    %c0_i32_0 = arith.constant 0 : i32
    %c0_i32_1 = arith.constant 0 : i32
    return %c0_i32, %c0_i32_0 : i32, i32
  }
  func.func @transform_13(%arg0: i32) -> (i32, i32) {
    %c0_i32 = arith.constant 0 : i32
    %c0_i32_0 = arith.constant 0 : i32
    %c0_i32_1 = arith.constant 0 : i32
    return %c0_i32, %c0_i32_0 : i32, i32
  }
  func.func @transform_14(%arg0: i32) -> (i32, i32) {
    %c0_i32 = arith.constant 0 : i32
    %c0_i32_0 = arith.constant 0 : i32
    %c0_i32_1 = arith.constant 0 : i32
    return %c0_i32, %c0_i32_0 : i32, i32
  }
  func.func @transform_15(%arg0: i32) -> (i32, i32) {
    %c0_i32 = arith.constant 0 : i32
    %c0_i32_0 = arith.constant 0 : i32
    %c0_i32_1 = arith.constant 0 : i32
    return %c0_i32, %c0_i32_0 : i32, i32
  }
  func.func @transform_16(%arg0: i32) -> (i32, i32) {
    %c0_i32 = arith.constant 0 : i32
    %c0_i32_0 = arith.constant 0 : i32
    %c0_i32_1 = arith.constant 0 : i32
    return %c0_i32, %c0_i32_0 : i32, i32
  }
  func.func @transform_17(%arg0: i32) -> (i32, i32) {
    %c0_i32 = arith.constant 0 : i32
    %c0_i32_0 = arith.constant 0 : i32
    %c0_i32_1 = arith.constant 0 : i32
    return %c0_i32, %c0_i32_0 : i32, i32
  }
  func.func @transform_18(%arg0: i32) -> (i32, i32) {
    %c0_i32 = arith.constant 0 : i32
    %c0_i32_0 = arith.constant 0 : i32
    %c0_i32_1 = arith.constant 0 : i32
    return %c0_i32, %c0_i32_0 : i32, i32
  }
  func.func @transform_19(%arg0: i32) -> (i32, i32, i32) {
    %c0_i32 = arith.constant 0 : i32
    %c0_i32_0 = arith.constant 0 : i32
    %c0_i32_1 = arith.constant 0 : i32
    return %arg0, %c0_i32, %c0_i32_0 : i32, i32, i32
  }
}

</mosaic_0001>

<llo_original>
// kernel: encoder_forward.5
$region0: #{encoder_forward.5}
  #allocation0 [shape = 'u32[]', space=smem, size = 0x4, offset = 0x4, fixed_abs, tag = 'smem constant byte address 0x4 - core index']
  #allocation1 [shape = 'u32[72,128]{1,0:T(1,128)}', space=vmem, size = 0x9000, scoped, tag = 'internal scratch']
  %s0 = inlined_call_operand.vmem [shape: f32[16,32], index: 0, kind: input, shape index: {}]
  %s1 = inlined_call_operand.vmem [shape: bf16[32,128], index: 1, kind: input, shape index: {}]
  %s2 = inlined_call_operand.vmem [shape: f32[1,128], index: 2, kind: input, shape index: {}]
  %s3 = inlined_call_operand.vmem [shape: f32[16,128], index: 3, kind: output, shape index: {}]
  %s4 = sld [smem:[#allocation0]]
  $region45: #{encoder_forward.5} parent=0
    _
  %s6 = ssub.s32 1, %s4
  %s7 = scalar_select 0, %s6, %s4
  loop: start=0, step=1, limit=4
  $region2: #{encoder_forward.5} parent=0 // loop_pre_header
    _
  $region3: #{encoder_forward.5} parent=0 // loop_header
    %s9 = sphi 0, %s13
    %p10 = scmp.ge.s32.totalorder %s9, 4
    %s19 = sphi 0, %s21
    %s22 = sphi 0, %s19
    %s23 = sphi 0, %s22
    %s39 = sphi 0, %s23
    %s43 = sphi 0, %s43
    %s45 = sphi 0, %s43
    %s46 = sphi 0, %s45
    %s60 = sphi 0, %s46
    %s64 = sphi 0, %s64
    %s66 = sphi 0, %s64
    %s67 = sphi 0, %s66
    %s81 = sphi 0, %s67
    %s87 = sphi 0, %s89
    %s90 = sphi 0, %s87
    %s91 = sphi 0, %s90
    %s107 = sphi 0, %s91
  $region4: #{encoder_forward.5} parent=0 // loop_header_branch
    %12 = sbr.rel (%p10) target = $region8
  $region5: #{encoder_forward.5} parent=0 // loop_body
    %s14 = ssub.s32 %s9, 1
    %s15 = ssub.s32 %s9, 2
    %s16 = sadd.s32 %s9, 1
    %s17 = ssub.s32 %s9, %s16
    %p18 = scmp.eq.s32.totalorder %s17, 0
    %s20 = sadd.s32 %s19, 1
    %s21 = scalar_select %p18, %s19, %s20
    %p24 = pneg %p18
    %p25 = scmp.eq.s32.totalorder %s9, 1
    %p26 = por %p24, %p25
    %p27 = scmp.ne.s32.totalorder %s19, %s22
    %p28 = scmp.eq.s32.totalorder %s9, 0
    %p29 = por %p27, %p28
    %p30 = scmp.ne.s32.totalorder %s19, %s22
    %p31 = scmp.eq.s32.totalorder %s14, 1
    %p32 = por %p30, %p31
    %p33 = scmp.ne.s32.totalorder %s22, %s23
    %p34 = scmp.eq.s32.totalorder %s14, 0
    %p35 = por %p33, %p34
    %p36 = scmp.ne.s32.totalorder %s22, %s23
    %p37 = scmp.eq.s32.totalorder %s15, 1
    %p38 = por %p36, %p37
    %p40 = scmp.ne.s32.totalorder %s23, %s39
    %p41 = scmp.eq.s32.totalorder %s15, 0
    %p42 = por %p40, %p41
    %s44 = sadd.s32 %s43, 1
    %p47 = scmp.eq.s32.totalorder %s9, 1
    %p48 = scmp.ne.s32.totalorder %s43, %s45
    %p49 = scmp.eq.s32.totalorder %s9, 0
    %p50 = por %p48, %p49
    %p51 = scmp.ne.s32.totalorder %s43, %s45
    %p52 = scmp.eq.s32.totalorder %s14, 1
    %p53 = por %p51, %p52
    %p54 = scmp.ne.s32.totalorder %s45, %s46
    %p55 = scmp.eq.s32.totalorder %s14, 0
    %p56 = por %p54, %p55
    %p57 = scmp.ne.s32.totalorder %s45, %s46
    %p58 = scmp.eq.s32.totalorder %s15, 1
    %p59 = por %p57, %p58
    %p61 = scmp.ne.s32.totalorder %s46, %s60
    %p62 = scmp.eq.s32.totalorder %s15, 0
    %p63 = por %p61, %p62
    %s65 = sadd.s32 %s64, 1
    %p68 = scmp.eq.s32.totalorder %s9, 1
    %p69 = scmp.ne.s32.totalorder %s64, %s66
    %p70 = scmp.eq.s32.totalorder %s9, 0
    %p71 = por %p69, %p70
    %p72 = scmp.ne.s32.totalorder %s64, %s66
    %p73 = scmp.eq.s32.totalorder %s14, 1
    %p74 = por %p72, %p73
    %p75 = scmp.ne.s32.totalorder %s66, %s67
    %p76 = scmp.eq.s32.totalorder %s14, 0
    %p77 = por %p75, %p76
    %p78 = scmp.ne.s32.totalorder %s66, %s67
    %p79 = scmp.eq.s32.totalorder %s15, 1
    %p80 = por %p78, %p79
    %p82 = scmp.ne.s32.totalorder %s67, %s81
    %p83 = scmp.eq.s32.totalorder %s15, 0
    %p84 = por %p82, %p83
    %s85 = ssub.s32 %s9, %s16
    %p86 = scmp.eq.s32.totalorder %s85, 0
    %s88 = sadd.s32 %s87, 1
    %s89 = scalar_select %p86, %s87, %s88
    %p92 = pneg %p86
    %p93 = scmp.eq.s32.totalorder %s9, 1
    %p94 = por %p92, %p93
    %p95 = scmp.ne.s32.totalorder %s87, %s90
    %p96 = scmp.eq.s32.totalorder %s9, 0
    %p97 = por %p95, %p96
    %p98 = scmp.ne.s32.totalorder %s87, %s90
    %p99 = scmp.eq.s32.totalorder %s14, 1
    %p100 = por %p98, %p99
    %p101 = scmp.ne.s32.totalorder %s90, %s91
    %p102 = scmp.eq.s32.totalorder %s14, 0
    %p103 = por %p101, %p102
    %p104 = scmp.ne.s32.totalorder %s90, %s91
    %p105 = scmp.eq.s32.totalorder %s15, 1
    %p106 = por %p104, %p105
    %p108 = scmp.ne.s32.totalorder %s91, %s107
    %p109 = scmp.eq.s32.totalorder %s15, 0
    %p110 = por %p108, %p109
    %p111 = scmp.le.s32.totalorder 1, %s9
    %p112 = scmp.lt.s32.totalorder %s9, 3
    %p113 = pnand %p111, %p112
    %p114 = pneg %p113
    // Predicated region
    $region9: #{encoder_forward.5} parent=5 // pred_check
      _
    $region10: #{encoder_forward.5} parent=5 // pred_check_branch
      %116 = sbr.rel (%p113) target = $region12
    $region11: #{encoder_forward.5} parent=5 // pred_region
      %s117 = ssub.s32 %s9, 1
      // Predicated region
      $region13: #{encoder_forward.5} parent=11 // pred_check
        %p118 = pneg %p56
      $region14: #{encoder_forward.5} parent=11 // pred_check_branch
        %120 = sbr.rel (%p118) target = $region16
      $region15: #{encoder_forward.5} parent=11 // pred_region
        _
      $region16: #{encoder_forward.5} parent=11 // pred_fallthru
        _
      // Predicated region
      $region17: #{encoder_forward.5} parent=11 // pred_check
        %p121 = pneg %p77
      $region18: #{encoder_forward.5} parent=11 // pred_check_branch
        %123 = sbr.rel (%p121) target = $region20
      $region19: #{encoder_forward.5} parent=11 // pred_region
        _
      $region20: #{encoder_forward.5} parent=11 // pred_fallthru
        _
    $region12: #{encoder_forward.5} parent=5 // pred_fallthru
      _
    %p124 = scmp.lt.s32.totalorder %s9, 2
    // Predicated region
    $region21: #{encoder_forward.5} parent=5 // pred_check
      %p125 = pneg %p124
    $region22: #{encoder_forward.5} parent=5 // pred_check_branch
      %127 = sbr.rel (%p125) target = $region24
    $region23: #{encoder_forward.5} parent=5 // pred_region
      // Predicated region
      $region25: #{encoder_forward.5} parent=23 // pred_check
        %p128 = pneg %p29
      $region26: #{encoder_forward.5} parent=23 // pred_check_branch
        %130 = sbr.rel (%p128) target = $region28
      $region27: #{encoder_forward.5} parent=23 // pred_region
        %p131 = scmp.lt.s32.totalorder %s9, 1
        %s132 = scalar_select %p131, %s9, 1
        %s133 = smul.addr %s132, 8
        %s134 = scalar_lea.vmem %s0, %s133
      $region28: #{encoder_forward.5} parent=23 // pred_fallthru
        _
    $region24: #{encoder_forward.5} parent=5 // pred_fallthru
      _
    %p135 = scmp.le.s32.totalorder 1, %s9
    %p136 = scmp.lt.s32.totalorder %s9, 3
    %p137 = pnand %p135, %p136
    %p138 = pneg %p137
    // Predicated region
    $region29: #{encoder_forward.5} parent=5 // pred_check
      _
    $region30: #{encoder_forward.5} parent=5 // pred_check_branch
      %140 = sbr.rel (%p137) target = $region32
    $region31: #{encoder_forward.5} parent=5 // pred_region
      %s141 = ssub.s32 %s9, 1
      %p142 = scmp.lt.s32.totalorder %s14, 1
      %s143 = scalar_select %p142, %s14, 1
      %s144 = smul.addr %s143, 8
      %s145 = scalar_lea.vmem %s0, %s144
      %p146 = pneg %p35
      %p147 = pneg %p32
      %p148 = pneg %p56
      %p149 = pneg %p53
      %p150 = pneg %p77
      %p151 = pneg %p74
      %p152 = pneg %p103
      %p153 = pneg %p100
      %p154 = scmp.lt.s32.totalorder %s14, 1
      %s155 = scalar_select %p154, %s14, 1
      %s156 = smul.addr %s155, 8
      %s157 = scalar_lea.vmem %s3, %s156
      %p158 = scmp.lt.s32.totalorder %s14, 1
      %s159 = scalar_select %p158, %s14, 1
      %s160 = smul.addr %s159, 8
      %s161 = scalar_lea.vmem %s0, %s160
      %p162 = scmp.lt.s32.totalorder %s14, 1
      %s163 = scalar_select %p162, %s14, 1
      %s164 = smul.addr %s163, 8
      %s165 = scalar_lea.vmem %s3, %s164
      %v167 = vld [vmem:[%s161] sm:$0xff]
      %v168 = vpack.c.bf16 %v167, %v167
      %v169 = vld [vmem:[%s1] sm:$0xf]
      %v170 = vld [vmem:[%s1 + $0x4] sm:$0xf]
      %v171 = vld [vmem:[%s1 + $0x8] sm:$0xf]
      %v172 = vld [vmem:[%s1 + $0xc] sm:$0xf]
      %v173 = vld [vmem:[%s2] sm:$0x1]
      %v175 = vperm.slane %v173, 0
      %v181 = vunpack.c.l.b16 %v169
      %v182 = vunpack.c.l.b16 %v170
      %v183 = vunpack.c.l.b16 %v171
      %v184 = vunpack.c.l.b16 %v172
      %v185 = vpack.c.b16 %v182, %v181
      %v186 = vpack.c.b16 %v184, %v183
      %vm189 = vcmask 261120
      %v191 = vsel %vm189, %v168, 0
      %193 = vmatpush.bf16.msra.mxu0 0
      %194 = vmatpush.bf16.msra.mxu0 0
      %195 = vmatpush.bf16.msra.mxu0 0
      %196 = vmatpush.bf16.msra.mxu0 0
      %197 = vmatpush.bf16.msra.mxu0 0
      %198 = vmatpush.bf16.msra.mxu0 0
      %199 = vmatpush.bf16.msra.mxu0 %v186
      %200 = vmatpush.bf16.msra.mxu0 %v185
      %201 = vmatmul.bf16.gmra.mxu0 %v191
      %v202 = vpop.f32.mrf.mxu0
      %v203 = vadd.f32 %v175, %v202
      %v204 = vpop.f32.mrf.mxu0
      %205 = vdwg.mxu0
      %206 = vst [vmem:[%s165] sm:$0xff] %v203
      %p207 = scmp.lt.s32.totalorder %s14, 1
      %s208 = scalar_select %p207, %s14, 1
      %s209 = smul.addr %s208, 8
      %s210 = scalar_lea.vmem %s3, %s209
      // Predicated region
      $region33: #{encoder_forward.5} parent=31 // pred_check
        %p211 = pneg %p100
      $region34: #{encoder_forward.5} parent=31 // pred_check_branch
        %213 = sbr.rel (%p211) target = $region36
      $region35: #{encoder_forward.5} parent=31 // pred_region
        _
      $region36: #{encoder_forward.5} parent=31 // pred_fallthru
        _
    $region32: #{encoder_forward.5} parent=5 // pred_fallthru
      _
    %p214 = scmp.le.s32.totalorder 2, %s9
    // Predicated region
    $region37: #{encoder_forward.5} parent=5 // pred_check
      %p215 = pneg %p214
    $region38: #{encoder_forward.5} parent=5 // pred_check_branch
      %217 = sbr.rel (%p215) target = $region40
    $region39: #{encoder_forward.5} parent=5 // pred_region
      %s218 = ssub.s32 %s9, 2
      // Predicated region
      $region41: #{encoder_forward.5} parent=39 // pred_check
        %p219 = pneg %p106
      $region42: #{encoder_forward.5} parent=39 // pred_check_branch
        %221 = sbr.rel (%p219) target = $region44
      $region43: #{encoder_forward.5} parent=39 // pred_region
        %p222 = scmp.lt.s32.totalorder %s15, 1
        %s223 = scalar_select %p222, %s15, 1
        %s224 = smul.addr %s223, 8
        %s225 = scalar_lea.vmem %s3, %s224
      $region44: #{encoder_forward.5} parent=39 // pred_fallthru
        _
    $region40: #{encoder_forward.5} parent=5 // pred_fallthru
      _
  $region6: #{encoder_forward.5} parent=0 // loop_footer
    %s13 = sadd.s32 1, %s9
  $region7: #{encoder_forward.5} parent=0 // loop_footer_branch
    %8 = sbr.rel target = $region3
  $region8: #{encoder_forward.5} parent=0 // loop_exit
    _

// kernel: encoder_forward.3
$region0: #{encoder_forward.3}
  #allocation0 [shape = 'u32[]', space=smem, size = 0x4, offset = 0x4, fixed_abs, tag = 'smem constant byte address 0x4 - core index']
  #allocation1 [shape = 'u32[72,128]{1,0:T(1,128)}', space=vmem, size = 0x9000, scoped, tag = 'internal scratch']
  %s0 = inlined_call_operand.vmem [shape: f32[2,8,32], index: 0, kind: input, shape index: {}]
  %s1 = inlined_call_operand.vmem [shape: f32[2,8,64], index: 1, kind: input, shape index: {}]
  %s2 = inlined_call_operand.vmem [shape: s32[4,8,8], index: 2, kind: input, shape index: {}]
  %s3 = inlined_call_operand.vmem [shape: f32[2,1,8], index: 3, kind: input, shape index: {}]
  %s4 = inlined_call_operand.vmem [shape: f32[2,8,9], index: 4, kind: input, shape index: {}]
  %s5 = inlined_call_operand.vmem [shape: f32[2,8], index: 5, kind: input, shape index: {}]
  %s6 = inlined_call_operand.vmem [shape: f32[1,32], index: 6, kind: input, shape index: {}]
  %s7 = inlined_call_operand.vmem [shape: f32[1,32], index: 7, kind: input, shape index: {}]
  %s8 = inlined_call_operand.vmem [shape: bf16[32,96], index: 8, kind: input, shape index: {}]
  %s9 = inlined_call_operand.vmem [shape: f32[1,96], index: 9, kind: input, shape index: {}]
  %s10 = inlined_call_operand.vmem [shape: bf16[64,96], index: 10, kind: input, shape index: {}]
  %s11 = inlined_call_operand.vmem [shape: bf16[32,32], index: 11, kind: input, shape index: {}]
  %s12 = inlined_call_operand.vmem [shape: f32[1,32], index: 12, kind: input, shape index: {}]
  %s13 = inlined_call_operand.vmem [shape: f32[1,32], index: 13, kind: input, shape index: {}]
  %s14 = inlined_call_operand.vmem [shape: f32[1,32], index: 14, kind: input, shape index: {}]
  %s15 = inlined_call_operand.vmem [shape: bf16[32,128], index: 15, kind: input, shape index: {}]
  %s16 = inlined_call_operand.vmem [shape: f32[1,128], index: 16, kind: input, shape index: {}]
  %s17 = inlined_call_operand.vmem [shape: bf16[128,32], index: 17, kind: input, shape index: {}]
  %s18 = inlined_call_operand.vmem [shape: f32[1,32], index: 18, kind: input, shape index: {}]
  %s19 = inlined_call_operand.vmem [shape: f32[2,8,32], index: 19, kind: output, shape index: {}]
  %s20 = sld [smem:[#allocation0]]
  $region109: #{encoder_forward.3} parent=0
    _
  %s22 = ssub.s32 1, %s20
  %s23 = scalar_select 0, %s22, %s20
  loop: start=0, step=1, limit=4
  $region2: #{encoder_forward.3} parent=0 // loop_pre_header
    _
  $region3: #{encoder_forward.3} parent=0 // loop_header
    %s25 = sphi 0, %s29
    %p26 = scmp.ge.s32.totalorder %s25, 4
    %s35 = sphi 0, %s37
    %s38 = sphi 0, %s35
    %s39 = sphi 0, %s38
    %s55 = sphi 0, %s39
    %s61 = sphi 0, %s63
    %s64 = sphi 0, %s61
    %s65 = sphi 0, %s64
    %s81 = sphi 0, %s65
    %s87 = sphi 0, %s89
    %s90 = sphi 0, %s87
    %s91 = sphi 0, %s90
    %s107 = sphi 0, %s91
    %s113 = sphi 0, %s115
    %s116 = sphi 0, %s113
    %s117 = sphi 0, %s116
    %s133 = sphi 0, %s117
    %s137 = sphi 0, %s137
    %s139 = sphi 0, %s137
    %s140 = sphi 0, %s139
    %s154 = sphi 0, %s140
    %s158 = sphi 0, %s158
    %s160 = sphi 0, %s158
    %s161 = sphi 0, %s160
    %s175 = sphi 0, %s161
    %s179 = sphi 0, %s179
    %s181 = sphi 0, %s179
    %s182 = sphi 0, %s181
    %s196 = sphi 0, %s182
    %s200 = sphi 0, %s200
    %s202 = sphi 0, %s200
    %s203 = sphi 0, %s202
    %s217 = sphi 0, %s203
    %s221 = sphi 0, %s221
    %s223 = sphi 0, %s221
    %s224 = sphi 0, %s223
    %s238 = sphi 0, %s224
    %s242 = sphi 0, %s242
    %s244 = sphi 0, %s242
    %s245 = sphi 0, %s244
    %s259 = sphi 0, %s245
    %s263 = sphi 0, %s263
    %s265 = sphi 0, %s263
    %s266 = sphi 0, %s265
    %s280 = sphi 0, %s266
    %s284 = sphi 0, %s284
    %s286 = sphi 0, %s284
    %s287 = sphi 0, %s286
    %s301 = sphi 0, %s287
    %s305 = sphi 0, %s305
    %s307 = sphi 0, %s305
    %s308 = sphi 0, %s307
    %s322 = sphi 0, %s308
    %s326 = sphi 0, %s326
    %s328 = sphi 0, %s326
    %s329 = sphi 0, %s328
    %s343 = sphi 0, %s329
    %s347 = sphi 0, %s347
    %s349 = sphi 0, %s347
    %s350 = sphi 0, %s349
    %s364 = sphi 0, %s350
    %s368 = sphi 0, %s368
    %s370 = sphi 0, %s368
    %s371 = sphi 0, %s370
    %s385 = sphi 0, %s371
    %s389 = sphi 0, %s389
    %s391 = sphi 0, %s389
    %s392 = sphi 0, %s391
    %s406 = sphi 0, %s392
    %s410 = sphi 0, %s410
    %s412 = sphi 0, %s410
    %s413 = sphi 0, %s412
    %s427 = sphi 0, %s413
    %s431 = sphi 0, %s431
    %s433 = sphi 0, %s431
    %s434 = sphi 0, %s433
    %s448 = sphi 0, %s434
    %s454 = sphi 0, %s456
    %s457 = sphi 0, %s454
    %s458 = sphi 0, %s457
    %s474 = sphi 0, %s458
  $region4: #{encoder_forward.3} parent=0 // loop_header_branch
    %28 = sbr.rel (%p26) target = $region8
  $region5: #{encoder_forward.3} parent=0 // loop_body
    %s30 = ssub.s32 %s25, 1
    %s31 = ssub.s32 %s25, 2
    %s32 = sadd.s32 %s25, 1
    %s33 = ssub.s32 %s25, %s32
    %p34 = scmp.eq.s32.totalorder %s33, 0
    %s36 = sadd.s32 %s35, 1
    %s37 = scalar_select %p34, %s35, %s36
    %p40 = pneg %p34
    %p41 = scmp.eq.s32.totalorder %s25, 1
    %p42 = por %p40, %p41
    %p43 = scmp.ne.s32.totalorder %s35, %s38
    %p44 = scmp.eq.s32.totalorder %s25, 0
    %p45 = por %p43, %p44
    %p46 = scmp.ne.s32.totalorder %s35, %s38
    %p47 = scmp.eq.s32.totalorder %s30, 1
    %p48 = por %p46, %p47
    %p49 = scmp.ne.s32.totalorder %s38, %s39
    %p50 = scmp.eq.s32.totalorder %s30, 0
    %p51 = por %p49, %p50
    %p52 = scmp.ne.s32.totalorder %s38, %s39
    %p53 = scmp.eq.s32.totalorder %s31, 1
    %p54 = por %p52, %p53
    %p56 = scmp.ne.s32.totalorder %s39, %s55
    %p57 = scmp.eq.s32.totalorder %s31, 0
    %p58 = por %p56, %p57
    %s59 = ssub.s32 %s25, %s32
    %p60 = scmp.eq.s32.totalorder %s59, 0
    %s62 = sadd.s32 %s61, 1
    %s63 = scalar_select %p60, %s61, %s62
    %p66 = pneg %p60
    %p67 = scmp.eq.s32.totalorder %s25, 1
    %p68 = por %p66, %p67
    %p69 = scmp.ne.s32.totalorder %s61, %s64
    %p70 = scmp.eq.s32.totalorder %s25, 0
    %p71 = por %p69, %p70
    %p72 = scmp.ne.s32.totalorder %s61, %s64
    %p73 = scmp.eq.s32.totalorder %s30, 1
    %p74 = por %p72, %p73
    %p75 = scmp.ne.s32.totalorder %s64, %s65
    %p76 = scmp.eq.s32.totalorder %s30, 0
    %p77 = por %p75, %p76
    %p78 = scmp.ne.s32.totalorder %s64, %s65
    %p79 = scmp.eq.s32.totalorder %s31, 1
    %p80 = por %p78, %p79
    %p82 = scmp.ne.s32.totalorder %s65, %s81
    %p83 = scmp.eq.s32.totalorder %s31, 0
    %p84 = por %p82, %p83
    %s85 = ssub.s32 %s25, %s32
    %p86 = scmp.eq.s32.totalorder %s85, 0
    %s88 = sadd.s32 %s87, 1
    %s89 = scalar_select %p86, %s87, %s88
    %p92 = pneg %p86
    %p93 = scmp.eq.s32.totalorder %s25, 1
    %p94 = por %p92, %p93
    %p95 = scmp.ne.s32.totalorder %s87, %s90
    %p96 = scmp.eq.s32.totalorder %s25, 0
    %p97 = por %p95, %p96
    %p98 = scmp.ne.s32.totalorder %s87, %s90
    %p99 = scmp.eq.s32.totalorder %s30, 1
    %p100 = por %p98, %p99
    %p101 = scmp.ne.s32.totalorder %s90, %s91
    %p102 = scmp.eq.s32.totalorder %s30, 0
    %p103 = por %p101, %p102
    %p104 = scmp.ne.s32.totalorder %s90, %s91
    %p105 = scmp.eq.s32.totalorder %s31, 1
    %p106 = por %p104, %p105
    %p108 = scmp.ne.s32.totalorder %s91, %s107
    %p109 = scmp.eq.s32.totalorder %s31, 0
    %p110 = por %p108, %p109
    %s111 = ssub.s32 %s25, %s32
    %p112 = scmp.eq.s32.totalorder %s111, 0
    %s114 = sadd.s32 %s113, 1
    %s115 = scalar_select %p112, %s113, %s114
    %p118 = pneg %p112
    %p119 = scmp.eq.s32.totalorder %s25, 1
    %p120 = por %p118, %p119
    %p121 = scmp.ne.s32.totalorder %s113, %s116
    %p122 = scmp.eq.s32.totalorder %s25, 0
    %p123 = por %p121, %p122
    %p124 = scmp.ne.s32.totalorder %s113, %s116
    %p125 = scmp.eq.s32.totalorder %s30, 1
    %p126 = por %p124, %p125
    %p127 = scmp.ne.s32.totalorder %s116, %s117
    %p128 = scmp.eq.s32.totalorder %s30, 0
    %p129 = por %p127, %p128
    %p130 = scmp.ne.s32.totalorder %s116, %s117
    %p131 = scmp.eq.s32.totalorder %s31, 1
    %p132 = por %p130, %p131
    %p134 = scmp.ne.s32.totalorder %s117, %s133
    %p135 = scmp.eq.s32.totalorder %s31, 0
    %p136 = por %p134, %p135
    %s138 = sadd.s32 %s137, 1
    %p141 = scmp.eq.s32.totalorder %s25, 1
    %p142 = scmp.ne.s32.totalorder %s137, %s139
    %p143 = scmp.eq.s32.totalorder %s25, 0
    %p144 = por %p142, %p143
    %p145 = scmp.ne.s32.totalorder %s137, %s139
    %p146 = scmp.eq.s32.totalorder %s30, 1
    %p147 = por %p145, %p146
    %p148 = scmp.ne.s32.totalorder %s139, %s140
    %p149 = scmp.eq.s32.totalorder %s30, 0
    %p150 = por %p148, %p149
    %p151 = scmp.ne.s32.totalorder %s139, %s140
    %p152 = scmp.eq.s32.totalorder %s31, 1
    %p153 = por %p151, %p152
    %p155 = scmp.ne.s32.totalorder %s140, %s154
    %p156 = scmp.eq.s32.totalorder %s31, 0
    %p157 = por %p155, %p156
    %s159 = sadd.s32 %s158, 1
    %p162 = scmp.eq.s32.totalorder %s25, 1
    %p163 = scmp.ne.s32.totalorder %s158, %s160
    %p164 = scmp.eq.s32.totalorder %s25, 0
    %p165 = por %p163, %p164
    %p166 = scmp.ne.s32.totalorder %s158, %s160
    %p167 = scmp.eq.s32.totalorder %s30, 1
    %p168 = por %p166, %p167
    %p169 = scmp.ne.s32.totalorder %s160, %s161
    %p170 = scmp.eq.s32.totalorder %s30, 0
    %p171 = por %p169, %p170
    %p172 = scmp.ne.s32.totalorder %s160, %s161
    %p173 = scmp.eq.s32.totalorder %s31, 1
    %p174 = por %p172, %p173
    %p176 = scmp.ne.s32.totalorder %s161, %s175
    %p177 = scmp.eq.s32.totalorder %s31, 0
    %p178 = por %p176, %p177
    %s180 = sadd.s32 %s179, 1
    %p183 = scmp.eq.s32.totalorder %s25, 1
    %p184 = scmp.ne.s32.totalorder %s179, %s181
    %p185 = scmp.eq.s32.totalorder %s25, 0
    %p186 = por %p184, %p185
    %p187 = scmp.ne.s32.totalorder %s179, %s181
    %p188 = scmp.eq.s32.totalorder %s30, 1
    %p189 = por %p187, %p188
    %p190 = scmp.ne.s32.totalorder %s181, %s182
    %p191 = scmp.eq.s32.totalorder %s30, 0
    %p192 = por %p190, %p191
    %p193 = scmp.ne.s32.totalorder %s181, %s182
    %p194 = scmp.eq.s32.totalorder %s31, 1
    %p195 = por %p193, %p194
    %p197 = scmp.ne.s32.totalorder %s182, %s196
    %p198 = scmp.eq.s32.totalorder %s31, 0
    %p199 = por %p197, %p198
    %s201 = sadd.s32 %s200, 1
    %p204 = scmp.eq.s32.totalorder %s25, 1
    %p205 = scmp.ne.s32.totalorder %s200, %s202
    %p206 = scmp.eq.s32.totalorder %s25, 0
    %p207 = por %p205, %p206
    %p208 = scmp.ne.s32.totalorder %s200, %s202
    %p209 = scmp.eq.s32.totalorder %s30, 1
    %p210 = por %p208, %p209
    %p211 = scmp.ne.s32.totalorder %s202, %s203
    %p212 = scmp.eq.s32.totalorder %s30, 0
    %p213 = por %p211, %p212
    %p214 = scmp.ne.s32.totalorder %s202, %s203
    %p215 = scmp.eq.s32.totalorder %s31, 1
    %p216 = por %p214, %p215
    %p218 = scmp.ne.s32.totalorder %s203, %s217
    %p219 = scmp.eq.s32.totalorder %s31, 0
    %p220 = por %p218, %p219
    %s222 = sadd.s32 %s221, 1
    %p225 = scmp.eq.s32.totalorder %s25, 1
    %p226 = scmp.ne.s32.totalorder %s221, %s223
    %p227 = scmp.eq.s32.totalorder %s25, 0
    %p228 = por %p226, %p227
    %p229 = scmp.ne.s32.totalorder %s221, %s223
    %p230 = scmp.eq.s32.totalorder %s30, 1
    %p231 = por %p229, %p230
    %p232 = scmp.ne.s32.totalorder %s223, %s224
    %p233 = scmp.eq.s32.totalorder %s30, 0
    %p234 = por %p232, %p233
    %p235 = scmp.ne.s32.totalorder %s223, %s224
    %p236 = scmp.eq.s32.totalorder %s31, 1
    %p237 = por %p235, %p236
    %p239 = scmp.ne.s32.totalorder %s224, %s238
    %p240 = scmp.eq.s32.totalorder %s31, 0
    %p241 = por %p239, %p240
    %s243 = sadd.s32 %s242, 1
    %p246 = scmp.eq.s32.totalorder %s25, 1
    %p247 = scmp.ne.s32.totalorder %s242, %s244
    %p248 = scmp.eq.s32.totalorder %s25, 0
    %p249 = por %p247, %p248
    %p250 = scmp.ne.s32.totalorder %s242, %s244
    %p251 = scmp.eq.s32.totalorder %s30, 1
    %p252 = por %p250, %p251
    %p253 = scmp.ne.s32.totalorder %s244, %s245
    %p254 = scmp.eq.s32.totalorder %s30, 0
    %p255 = por %p253, %p254
    %p256 = scmp.ne.s32.totalorder %s244, %s245
    %p257 = scmp.eq.s32.totalorder %s31, 1
    %p258 = por %p256, %p257
    %p260 = scmp.ne.s32.totalorder %s245, %s259
    %p261 = scmp.eq.s32.totalorder %s31, 0
    %p262 = por %p260, %p261
    %s264 = sadd.s32 %s263, 1
    %p267 = scmp.eq.s32.totalorder %s25, 1
    %p268 = scmp.ne.s32.totalorder %s263, %s265
    %p269 = scmp.eq.s32.totalorder %s25, 0
    %p270 = por %p268, %p269
    %p271 = scmp.ne.s32.totalorder %s263, %s265
    %p272 = scmp.eq.s32.totalorder %s30, 1
    %p273 = por %p271, %p272
    %p274 = scmp.ne.s32.totalorder %s265, %s266
    %p275 = scmp.eq.s32.totalorder %s30, 0
    %p276 = por %p274, %p275
    %p277 = scmp.ne.s32.totalorder %s265, %s266
    %p278 = scmp.eq.s32.totalorder %s31, 1
    %p279 = por %p277, %p278
    %p281 = scmp.ne.s32.totalorder %s266, %s280
    %p282 = scmp.eq.s32.totalorder %s31, 0
    %p283 = por %p281, %p282
    %s285 = sadd.s32 %s284, 1
    %p288 = scmp.eq.s32.totalorder %s25, 1
    %p289 = scmp.ne.s32.totalorder %s284, %s286
    %p290 = scmp.eq.s32.totalorder %s25, 0
    %p291 = por %p289, %p290
    %p292 = scmp.ne.s32.totalorder %s284, %s286
    %p293 = scmp.eq.s32.totalorder %s30, 1
    %p294 = por %p292, %p293
    %p295 = scmp.ne.s32.totalorder %s286, %s287
    %p296 = scmp.eq.s32.totalorder %s30, 0
    %p297 = por %p295, %p296
    %p298 = scmp.ne.s32.totalorder %s286, %s287
    %p299 = scmp.eq.s32.totalorder %s31, 1
    %p300 = por %p298, %p299
    %p302 = scmp.ne.s32.totalorder %s287, %s301
    %p303 = scmp.eq.s32.totalorder %s31, 0
    %p304 = por %p302, %p303
    %s306 = sadd.s32 %s305, 1
    %p309 = scmp.eq.s32.totalorder %s25, 1
    %p310 = scmp.ne.s32.totalorder %s305, %s307
    %p311 = scmp.eq.s32.totalorder %s25, 0
    %p312 = por %p310, %p311
    %p313 = scmp.ne.s32.totalorder %s305, %s307
    %p314 = scmp.eq.s32.totalorder %s30, 1
    %p315 = por %p313, %p314
    %p316 = scmp.ne.s32.totalorder %s307, %s308
    %p317 = scmp.eq.s32.totalorder %s30, 0
    %p318 = por %p316, %p317
    %p319 = scmp.ne.s32.totalorder %s307, %s308
    %p320 = scmp.eq.s32.totalorder %s31, 1
    %p321 = por %p319, %p320
    %p323 = scmp.ne.s32.totalorder %s308, %s322
    %p324 = scmp.eq.s32.totalorder %s31, 0
    %p325 = por %p323, %p324
    %s327 = sadd.s32 %s326, 1
    %p330 = scmp.eq.s32.totalorder %s25, 1
    %p331 = scmp.ne.s32.totalorder %s326, %s328
    %p332 = scmp.eq.s32.totalorder %s25, 0
    %p333 = por %p331, %p332
    %p334 = scmp.ne.s32.totalorder %s326, %s328
    %p335 = scmp.eq.s32.totalorder %s30, 1
    %p336 = por %p334, %p335
    %p337 = scmp.ne.s32.totalorder %s328, %s329
    %p338 = scmp.eq.s32.totalorder %s30, 0
    %p339 = por %p337, %p338
    %p340 = scmp.ne.s32.totalorder %s328, %s329
    %p341 = scmp.eq.s32.totalorder %s31, 1
    %p342 = por %p340, %p341
    %p344 = scmp.ne.s32.totalorder %s329, %s343
    %p345 = scmp.eq.s32.totalorder %s31, 0
    %p346 = por %p344, %p345
    %s348 = sadd.s32 %s347, 1
    %p351 = scmp.eq.s32.totalorder %s25, 1
    %p352 = scmp.ne.s32.totalorder %s347, %s349
    %p353 = scmp.eq.s32.totalorder %s25, 0
    %p354 = por %p352, %p353
    %p355 = scmp.ne.s32.totalorder %s347, %s349
    %p356 = scmp.eq.s32.totalorder %s30, 1
    %p357 = por %p355, %p356
    %p358 = scmp.ne.s32.totalorder %s349, %s350
    %p359 = scmp.eq.s32.totalorder %s30, 0
    %p360 = por %p358, %p359
    %p361 = scmp.ne.s32.totalorder %s349, %s350
    %p362 = scmp.eq.s32.totalorder %s31, 1
    %p363 = por %p361, %p362
    %p365 = scmp.ne.s32.totalorder %s350, %s364
    %p366 = scmp.eq.s32.totalorder %s31, 0
    %p367 = por %p365, %p366
    %s369 = sadd.s32 %s368, 1
    %p372 = scmp.eq.s32.totalorder %s25, 1
    %p373 = scmp.ne.s32.totalorder %s368, %s370
    %p374 = scmp.eq.s32.totalorder %s25, 0
    %p375 = por %p373, %p374
    %p376 = scmp.ne.s32.totalorder %s368, %s370
    %p377 = scmp.eq.s32.totalorder %s30, 1
    %p378 = por %p376, %p377
    %p379 = scmp.ne.s32.totalorder %s370, %s371
    %p380 = scmp.eq.s32.totalorder %s30, 0
    %p381 = por %p379, %p380
    %p382 = scmp.ne.s32.totalorder %s370, %s371
    %p383 = scmp.eq.s32.totalorder %s31, 1
    %p384 = por %p382, %p383
    %p386 = scmp.ne.s32.totalorder %s371, %s385
    %p387 = scmp.eq.s32.totalorder %s31, 0
    %p388 = por %p386, %p387
    %s390 = sadd.s32 %s389, 1
    %p393 = scmp.eq.s32.totalorder %s25, 1
    %p394 = scmp.ne.s32.totalorder %s389, %s391
    %p395 = scmp.eq.s32.totalorder %s25, 0
    %p396 = por %p394, %p395
    %p397 = scmp.ne.s32.totalorder %s389, %s391
    %p398 = scmp.eq.s32.totalorder %s30, 1
    %p399 = por %p397, %p398
    %p400 = scmp.ne.s32.totalorder %s391, %s392
    %p401 = scmp.eq.s32.totalorder %s30, 0
    %p402 = por %p400, %p401
    %p403 = scmp.ne.s32.totalorder %s391, %s392
    %p404 = scmp.eq.s32.totalorder %s31, 1
    %p405 = por %p403, %p404
    %p407 = scmp.ne.s32.totalorder %s392, %s406
    %p408 = scmp.eq.s32.totalorder %s31, 0
    %p409 = por %p407, %p408
    %s411 = sadd.s32 %s410, 1
    %p414 = scmp.eq.s32.totalorder %s25, 1
    %p415 = scmp.ne.s32.totalorder %s410, %s412
    %p416 = scmp.eq.s32.totalorder %s25, 0
    %p417 = por %p415, %p416
    %p418 = scmp.ne.s32.totalorder %s410, %s412
    %p419 = scmp.eq.s32.totalorder %s30, 1
    %p420 = por %p418, %p419
    %p421 = scmp.ne.s32.totalorder %s412, %s413
    %p422 = scmp.eq.s32.totalorder %s30, 0
    %p423 = por %p421, %p422
    %p424 = scmp.ne.s32.totalorder %s412, %s413
    %p425 = scmp.eq.s32.totalorder %s31, 1
    %p426 = por %p424, %p425
    %p428 = scmp.ne.s32.totalorder %s413, %s427
    %p429 = scmp.eq.s32.totalorder %s31, 0
    %p430 = por %p428, %p429
    %s432 = sadd.s32 %s431, 1
    %p435 = scmp.eq.s32.totalorder %s25, 1
    %p436 = scmp.ne.s32.totalorder %s431, %s433
    %p437 = scmp.eq.s32.totalorder %s25, 0
    %p438 = por %p436, %p437
    %p439 = scmp.ne.s32.totalorder %s431, %s433
    %p440 = scmp.eq.s32.totalorder %s30, 1
    %p441 = por %p439, %p440
    %p442 = scmp.ne.s32.totalorder %s433, %s434
    %p443 = scmp.eq.s32.totalorder %s30, 0
    %p444 = por %p442, %p443
    %p445 = scmp.ne.s32.totalorder %s433, %s434
    %p446 = scmp.eq.s32.totalorder %s31, 1
    %p447 = por %p445, %p446
    %p449 = scmp.ne.s32.totalorder %s434, %s448
    %p450 = scmp.eq.s32.totalorder %s31, 0
    %p451 = por %p449, %p450
    %s452 = ssub.s32 %s25, %s32
    %p453 = scmp.eq.s32.totalorder %s452, 0
    %s455 = sadd.s32 %s454, 1
    %s456 = scalar_select %p453, %s454, %s455
    %p459 = pneg %p453
    %p460 = scmp.eq.s32.totalorder %s25, 1
    %p461 = por %p459, %p460
    %p462 = scmp.ne.s32.totalorder %s454, %s457
    %p463 = scmp.eq.s32.totalorder %s25, 0
    %p464 = por %p462, %p463
    %p465 = scmp.ne.s32.totalorder %s454, %s457
    %p466 = scmp.eq.s32.totalorder %s30, 1
    %p467 = por %p465, %p466
    %p468 = scmp.ne.s32.totalorder %s457, %s458
    %p469 = scmp.eq.s32.totalorder %s30, 0
    %p470 = por %p468, %p469
    %p471 = scmp.ne.s32.totalorder %s457, %s458
    %p472 = scmp.eq.s32.totalorder %s31, 1
    %p473 = por %p471, %p472
    %p475 = scmp.ne.s32.totalorder %s458, %s474
    %p476 = scmp.eq.s32.totalorder %s31, 0
    %p477 = por %p475, %p476
    %p478 = scmp.le.s32.totalorder 1, %s25
    %p479 = scmp.lt.s32.totalorder %s25, 3
    %p480 = pnand %p478, %p479
    %p481 = pneg %p480
    // Predicated region
    $region9: #{encoder_forward.3} parent=5 // pred_check
      _
    $region10: #{encoder_forward.3} parent=5 // pred_check_branch
      %483 = sbr.rel (%p480) target = $region12
    $region11: #{encoder_forward.3} parent=5 // pred_region
      %s484 = ssub.s32 %s25, 1
      // Predicated region
      $region13: #{encoder_forward.3} parent=11 // pred_check
        %p485 = pneg %p150
      $region14: #{encoder_forward.3} parent=11 // pred_check_branch
        %487 = sbr.rel (%p485) target = $region16
      $region15: #{encoder_forward.3} parent=11 // pred_region
        _
      $region16: #{encoder_forward.3} parent=11 // pred_fallthru
        _
      // Predicated region
      $region17: #{encoder_forward.3} parent=11 // pred_check
        %p488 = pneg %p171
      $region18: #{encoder_forward.3} parent=11 // pred_check_branch
        %490 = sbr.rel (%p488) target = $region20
      $region19: #{encoder_forward.3} parent=11 // pred_region
        _
      $region20: #{encoder_forward.3} parent=11 // pred_fallthru
        _
      // Predicated region
      $region21: #{encoder_forward.3} parent=11 // pred_check
        %p491 = pneg %p192
      $region22: #{encoder_forward.3} parent=11 // pred_check_branch
        %493 = sbr.rel (%p491) target = $region24
      $region23: #{encoder_forward.3} parent=11 // pred_region
        _
      $region24: #{encoder_forward.3} parent=11 // pred_fallthru
        _
      // Predicated region
      $region25: #{encoder_forward.3} parent=11 // pred_check
        %p494 = pneg %p213
      $region26: #{encoder_forward.3} parent=11 // pred_check_branch
        %496 = sbr.rel (%p494) target = $region28
      $region27: #{encoder_forward.3} parent=11 // pred_region
        _
      $region28: #{encoder_forward.3} parent=11 // pred_fallthru
        _
      // Predicated region
      $region29: #{encoder_forward.3} parent=11 // pred_check
        %p497 = pneg %p234
      $region30: #{encoder_forward.3} parent=11 // pred_check_branch
        %499 = sbr.rel (%p497) target = $region32
      $region31: #{encoder_forward.3} parent=11 // pred_region
        _
      $region32: #{encoder_forward.3} parent=11 // pred_fallthru
        _
      // Predicated region
      $region33: #{encoder_forward.3} parent=11 // pred_check
        %p500 = pneg %p255
      $region34: #{encoder_forward.3} parent=11 // pred_check_branch
        %502 = sbr.rel (%p500) target = $region36
      $region35: #{encoder_forward.3} parent=11 // pred_region
        _
      $region36: #{encoder_forward.3} parent=11 // pred_fallthru
        _
      // Predicated region
      $region37: #{encoder_forward.3} parent=11 // pred_check
        %p503 = pneg %p276
      $region38: #{encoder_forward.3} parent=11 // pred_check_branch
        %505 = sbr.rel (%p503) target = $region40
      $region39: #{encoder_forward.3} parent=11 // pred_region
        _
      $region40: #{encoder_forward.3} parent=11 // pred_fallthru
        _
      // Predicated region
      $region41: #{encoder_forward.3} parent=11 // pred_check
        %p506 = pneg %p297
      $region42: #{encoder_forward.3} parent=11 // pred_check_branch
        %508 = sbr.rel (%p506) target = $region44
      $region43: #{encoder_forward.3} parent=11 // pred_region
        _
      $region44: #{encoder_forward.3} parent=11 // pred_fallthru
        _
      // Predicated region
      $region45: #{encoder_forward.3} parent=11 // pred_check
        %p509 = pneg %p318
      $region46: #{encoder_forward.3} parent=11 // pred_check_branch
        %511 = sbr.rel (%p509) target = $region48
      $region47: #{encoder_forward.3} parent=11 // pred_region
        _
      $region48: #{encoder_forward.3} parent=11 // pred_fallthru
        _
      // Predicated region
      $region49: #{encoder_forward.3} parent=11 // pred_check
        %p512 = pneg %p339
      $region50: #{encoder_forward.3} parent=11 // pred_check_branch
        %514 = sbr.rel (%p512) target = $region52
      $region51: #{encoder_forward.3} parent=11 // pred_region
        _
      $region52: #{encoder_forward.3} parent=11 // pred_fallthru
        _
      // Predicated region
      $region53: #{encoder_forward.3} parent=11 // pred_check
        %p515 = pneg %p360
      $region54: #{encoder_forward.3} parent=11 // pred_check_branch
        %517 = sbr.rel (%p515) target = $region56
      $region55: #{encoder_forward.3} parent=11 // pred_region
        _
      $region56: #{encoder_forward.3} parent=11 // pred_fallthru
        _
      // Predicated region
      $region57: #{encoder_forward.3} parent=11 // pred_check
        %p518 = pneg %p381
      $region58: #{encoder_forward.3} parent=11 // pred_check_branch
        %520 = sbr.rel (%p518) target = $region60
      $region59: #{encoder_forward.3} parent=11 // pred_region
        _
      $region60: #{encoder_forward.3} parent=11 // pred_fallthru
        _
      // Predicated region
      $region61: #{encoder_forward.3} parent=11 // pred_check
        %p521 = pneg %p402
      $region62: #{encoder_forward.3} parent=11 // pred_check_branch
        %523 = sbr.rel (%p521) target = $region64
      $region63: #{encoder_forward.3} parent=11 // pred_region
        _
      $region64: #{encoder_forward.3} parent=11 // pred_fallthru
        _
      // Predicated region
      $region65: #{encoder_forward.3} parent=11 // pred_check
        %p524 = pneg %p423
      $region66: #{encoder_forward.3} parent=11 // pred_check_branch
        %526 = sbr.rel (%p524) target = $region68
      $region67: #{encoder_forward.3} parent=11 // pred_region
        _
      $region68: #{encoder_forward.3} parent=11 // pred_fallthru
        _
      // Predicated region
      $region69: #{encoder_forward.3} parent=11 // pred_check
        %p527 = pneg %p444
      $region70: #{encoder_forward.3} parent=11 // pred_check_branch
        %529 = sbr.rel (%p527) target = $region72
      $region71: #{encoder_forward.3} parent=11 // pred_region
        _
      $region72: #{encoder_forward.3} parent=11 // pred_fallthru
        _
    $region12: #{encoder_forward.3} parent=5 // pred_fallthru
      _
    %p530 = scmp.lt.s32.totalorder %s25, 2
    // Predicated region
    $region73: #{encoder_forward.3} parent=5 // pred_check
      %p531 = pneg %p530
    $region74: #{encoder_forward.3} parent=5 // pred_check_branch
      %533 = sbr.rel (%p531) target = $region76
    $region75: #{encoder_forward.3} parent=5 // pred_region
      // Predicated region
      $region77: #{encoder_forward.3} parent=75 // pred_check
        %p534 = pneg %p45
      $region78: #{encoder_forward.3} parent=75 // pred_check_branch
        %536 = sbr.rel (%p534) target = $region80
      $region79: #{encoder_forward.3} parent=75 // pred_region
        %p537 = scmp.lt.s32.totalorder %s25, 1
        %s538 = scalar_select %p537, %s25, 1
        %s539 = smul.addr %s538, 8
        %s540 = scalar_lea.vmem %s0, %s539
      $region80: #{encoder_forward.3} parent=75 // pred_fallthru
        _
      // Predicated region
      $region81: #{encoder_forward.3} parent=75 // pred_check
        %p541 = pneg %p71
      $region82: #{encoder_forward.3} parent=75 // pred_check_branch
        %543 = sbr.rel (%p541) target = $region84
      $region83: #{encoder_forward.3} parent=75 // pred_region
        %p544 = scmp.lt.s32.totalorder %s25, 1
        %s545 = scalar_select %p544, %s25, 1
        %s546 = smul.addr %s545, 8
        %s547 = scalar_lea.vmem %s1, %s546
      $region84: #{encoder_forward.3} parent=75 // pred_fallthru
        _
      // Predicated region
      $region85: #{encoder_forward.3} parent=75 // pred_check
        %p548 = pneg %p97
      $region86: #{encoder_forward.3} parent=75 // pred_check_branch
        %550 = sbr.rel (%p548) target = $region88
      $region87: #{encoder_forward.3} parent=75 // pred_region
        %s551 = smul.u32 2, %s25
        %p552 = scmp.lt.s32.totalorder %s551, 3
        %s553 = scalar_select %p552, %s551, 3
        %s554 = smul.addr %s553, 8
        %s555 = scalar_lea.vmem %s2, %s554
        %s556 = smul.u32 2, %s25
      $region88: #{encoder_forward.3} parent=75 // pred_fallthru
        _
      // Predicated region
      $region89: #{encoder_forward.3} parent=75 // pred_check
        %p557 = pneg %p123
      $region90: #{encoder_forward.3} parent=75 // pred_check_branch
        %559 = sbr.rel (%p557) target = $region92
      $region91: #{encoder_forward.3} parent=75 // pred_region
        %p560 = scmp.lt.s32.totalorder %s25, 1
        %s561 = scalar_select %p560, %s25, 1
        %s562 = scalar_lea.vmem %s3, %s561
      $region92: #{encoder_forward.3} parent=75 // pred_fallthru
        _
    $region76: #{encoder_forward.3} parent=5 // pred_fallthru
      _
    %p563 = scmp.le.s32.totalorder 1, %s25
    %p564 = scmp.lt.s32.totalorder %s25, 3
    %p565 = pnand %p563, %p564
    %p566 = pneg %p565
    // Predicated region
    $region93: #{encoder_forward.3} parent=5 // pred_check
      _
    $region94: #{encoder_forward.3} parent=5 // pred_check_branch
      %568 = sbr.rel (%p565) target = $region96
    $region95: #{encoder_forward.3} parent=5 // pred_region
      %s569 = ssub.s32 %s25, 1
      %p570 = scmp.lt.s32.totalorder %s30, 1
      %s571 = scalar_select %p570, %s30, 1
      %s572 = smul.addr %s571, 8
      %s573 = scalar_lea.vmem %s0, %s572
      %p574 = pneg %p51
      %p575 = pneg %p48
      %p576 = scmp.lt.s32.totalorder %s30, 1
      %s577 = scalar_select %p576, %s30, 1
      %s578 = smul.addr %s577, 8
      %s579 = scalar_lea.vmem %s1, %s578
      %p580 = pneg %p77
      %p581 = pneg %p74
      %s582 = smul.u32 2, %s30
      %p583 = scmp.lt.s32.totalorder %s582, 3
      %s584 = scalar_select %p583, %s582, 3
      %s585 = smul.addr %s584, 8
      %s586 = scalar_lea.vmem %s2, %s585
      %p587 = pneg %p103
      %p588 = pneg %p100
      %p589 = scmp.lt.s32.totalorder %s30, 1
      %s590 = scalar_select %p589, %s30, 1
      %s591 = scalar_lea.vmem %s3, %s590
      %p592 = pneg %p129
      %p593 = pneg %p126
      %p594 = pneg %p150
      %p595 = pneg %p147
      %p596 = pneg %p171
      %p597 = pneg %p168
      %p598 = pneg %p192
      %p599 = pneg %p189
      %p600 = pneg %p213
      %p601 = pneg %p210
      %p602 = pneg %p234
      %p603 = pneg %p231
      %p604 = pneg %p255
      %p605 = pneg %p252
      %p606 = pneg %p276
      %p607 = pneg %p273
      %p608 = pneg %p297
      %p609 = pneg %p294
      %p610 = pneg %p318
      %p611 = pneg %p315
      %p612 = pneg %p339
      %p613 = pneg %p336
      %p614 = pneg %p360
      %p615 = pneg %p357
      %p616 = pneg %p381
      %p617 = pneg %p378
      %p618 = pneg %p402
      %p619 = pneg %p399
      %p620 = pneg %p423
      %p621 = pneg %p420
      %p622 = pneg %p444
      %p623 = pneg %p441
      %p624 = pneg %p470
      %p625 = pneg %p467
      %p626 = scmp.lt.s32.totalorder %s30, 1
      %s627 = scalar_select %p626, %s30, 1
      %s628 = smul.addr %s627, 8
      %s629 = scalar_lea.vmem %s19, %s628
      %p630 = scmp.lt.s32.totalorder %s30, 1
      %s631 = scalar_select %p630, %s30, 1
      %s632 = smul.addr %s631, 8
      %s633 = scalar_lea.vmem %s0, %s632
      %p634 = scmp.lt.s32.totalorder %s30, 1
      %s635 = scalar_select %p634, %s30, 1
      %s636 = smul.addr %s635, 8
      %s637 = scalar_lea.vmem %s1, %s636
      %s638 = smul.u32 2, %s30
      %p639 = scmp.lt.s32.totalorder %s638, 3
      %s640 = scalar_select %p639, %s638, 3
      %s641 = smul.addr %s640, 8
      %s642 = scalar_lea.vmem %s2, %s641
      %s643 = smul.u32 2, %s30
      %p644 = scmp.lt.s32.totalorder %s30, 1
      %s645 = scalar_select %p644, %s30, 1
      %s646 = scalar_lea.vmem %s3, %s645
      %p647 = scmp.lt.s32.totalorder %s30, 1
      %s648 = scalar_select %p647, %s30, 1
      %s649 = smul.addr %s648, 8
      %s650 = scalar_lea.vmem %s19, %s649
      %v652 = vld [vmem:[%s633] sm:$0xff]
      %vm653 = vcmask 261120
      %v654 = vsel %vm653, %v652, 0.0
      %655 = vadd.xlane.f32.xlu0 %v654
      %v656 = vpop.xlane.xlu0 %655
      %v657 = vrcp.pop 32.0
      %v658 = vmul.f32 32.0, %v657
      %v659 = vsub.f32 1.0, %v658
      %v660 = vmul.f32 %v657, %v659
      %v661 = vadd.f32 %v657, %v660
      %vm662 = vweird.f32 %v657
      %v663 = vsel %vm662, %v657, %v661
      %v664 = vmul.f32 %v656, %v663
      %v665 = vsub.f32 %v652, %v664
      %v666 = vmul.f32 %v665, %v665
      %v667 = vsel %vm653, %v666, 0.0
      %668 = vadd.xlane.f32.xlu0 %v667
      %v669 = vpop.xlane.xlu0 %668
      %v670 = vmul.f32 %v669, %v663
      %v671 = vadd.f32 %v670, 1e-05
      %v672 = vrsqrt.pop %v671
      %v673 = vmul.f32 %v672, %v671
      %v674 = vmul.f32 %v673, %v672
      %v675 = vmul.f32 0.5, %v674
      %v676 = vsub.f32 1.5, %v675
      %v677 = vmul.f32 %v672, %v676
      %vm678 = vweird.f32 %v671
      %vm679 = vweird.f32 %v672
      %vm680 = vmor %vm678, %vm679
      %v681 = vsel %vm680, %v672, %v677
      %v682 = vmul.f32 %v665, %v681
      %v683 = vld [vmem:[%s6] sm:$0x1]
      %v685 = vperm.slane %v683, 0
      %v687 = vmul.f32 %v682, %v685
      %v688 = vld [vmem:[%s7] sm:$0x1]
      %v690 = vperm.slane %v688, 0
      %v692 = vadd.f32 %v687, %v690
      %v693 = vpack.c.bf16 %v692, %v692
      %v694 = vld [vmem:[%s8] sm:$0xf]
      %v695 = vld [vmem:[%s8 + $0x4] sm:$0xf]
      %v696 = vld [vmem:[%s8 + $0x8] sm:$0xf]
      %v697 = vld [vmem:[%s8 + $0xc] sm:$0xf]
      %v698 = vld [vmem:[%s637] sm:$0xff]
      %v699 = vpack.c.bf16 %v698, %v698
      %v700 = vld [vmem:[%s10] sm:$0xf]
      %v701 = vld [vmem:[%s10 + $0x4] sm:$0xf]
      %v702 = vld [vmem:[%s10 + $0x8] sm:$0xf]
      %v703 = vld [vmem:[%s10 + $0xc] sm:$0xf]
      %v704 = vld [vmem:[%s10 + $0x10] sm:$0xf]
      %v705 = vld [vmem:[%s10 + $0x14] sm:$0xf]
      %v706 = vld [vmem:[%s10 + $0x18] sm:$0xf]
      %v707 = vld [vmem:[%s10 + $0x1c] sm:$0xf]
      %v716 = vunpack.c.l.b16 %v700
      %v717 = vunpack.c.l.b16 %v701
      %v718 = vunpack.c.l.b16 %v702
      %v719 = vunpack.c.l.b16 %v703
      %v720 = vunpack.c.l.b16 %v704
      %v721 = vunpack.c.l.b16 %v705
      %v722 = vunpack.c.l.b16 %v706
      %v723 = vunpack.c.l.b16 %v707
      %v724 = vpack.c.b16 %v717, %v716
      %v725 = vpack.c.b16 %v719, %v718
      %v726 = vpack.c.b16 %v721, %v720
      %v727 = vpack.c.b16 %v723, %v722
      %vm732 = vcmask 523264
      %v734 = vsel %vm732, %v699, 0
      %736 = vmatpush.bf16.msra.mxu0 0
      %737 = vmatpush.bf16.msra.mxu0 0
      %738 = vmatpush.bf16.msra.mxu0 0
      %739 = vmatpush.bf16.msra.mxu0 0
      %740 = vmatpush.bf16.msra.mxu0 %v727
      %741 = vmatpush.bf16.msra.mxu0 %v726
      %742 = vmatpush.bf16.msra.mxu0 %v725
      %743 = vmatpush.bf16.msra.mxu0 %v724
      %744 = vmatmul.bf16.gmra.mxu0 %v734
      %v745 = vpop.f32.mrf.mxu0
      %v746 = vadd.f32 0.0, %v745
      %v747 = vpop.f32.mrf.mxu0
      %748 = vdwg.mxu0
      %v753 = vunpack.c.l.b16 %v694
      %v754 = vunpack.c.l.b16 %v695
      %v755 = vunpack.c.l.b16 %v696
      %v756 = vunpack.c.l.b16 %v697
      %v757 = vpack.c.b16 %v754, %v753
      %v758 = vpack.c.b16 %v756, %v755
      %v762 = vsel %vm653, %v693, 0
      %764 = vmatpush.bf16.msra.mxu0 0
      %765 = vmatpush.bf16.msra.mxu0 0
      %766 = vmatpush.bf16.msra.mxu0 0
      %767 = vmatpush.bf16.msra.mxu0 0
      %768 = vmatpush.bf16.msra.mxu0 0
      %769 = vmatpush.bf16.msra.mxu0 0
      %770 = vmatpush.bf16.msra.mxu0 %v758
      %771 = vmatpush.bf16.msra.mxu0 %v757
      %772 = vmatmul.bf16.gmra.mxu0 %v762
      %v773 = vpop.f32.mrf.mxu0
      %v774 = vadd.f32 %v746, %v773
      %v775 = vpop.f32.mrf.mxu0
      %776 = vdwg.mxu0
      %v777 = vld [vmem:[%s9] sm:$0x1]
      %v779 = vperm.slane %v777, 0
      %v781 = vadd.f32 %v774, %v779
      %v782 = vld [vmem:[%s646] sm:$0x1]
      %v783 = vld [vmem:[%s5] sm:$0x3]
      %v784 = vld [vmem:[%s642] sm:$0xff]
      %v785 = vld [vmem:[%s642 + $0x8] sm:$0xff]
      %v786 = vld [vmem:[%s4] sm:$0xff]
      %v787 = vld [vmem:[%s4 + $0x8] sm:$0xff]
      %v788 = vpack.c.bf16 %v781, %v781
      %v789 = vperm.slane %v783, 0
      %v790 = vadd.f32 %v781, %v789
      %v791 = vpack.c.bf16 %v790, %v790
      %v792 = vpack.c.bf16 %v786, %v786
      %vm793 = vcmask 64512
      %v795 = vsel %vm793, %v791, 0
      %vm797 = vcmask 1043456
      %v799 = vsel %vm797, %v792, 0
      %801 = vmatpush.bf16.msra.mxu0 0
      %802 = vmatpush.bf16.msra.mxu0 0
      %803 = vmatpush.bf16.msra.mxu0 0
      %804 = vmatpush.bf16.msra.mxu0 0
      %805 = vmatpush.bf16.msra.mxu0 0
      %806 = vmatpush.bf16.msra.mxu0 0
      %807 = vmatpush.bf16.msra.mxu0 0
      %808 = vmatpush.bf16.msra.mxu0 %v799
      %809 = vmatmul.bf16.gmra.mxu0 %v795
      %v810 = vpop.f32.mrf.mxu0
      %v811 = vadd.f32 0.0, %v810
      %v812 = vpop.f32.mrf.mxu0
      %813 = vdwg.mxu0
      %v814 = vperm.slane %v784, 0
      %v815 = vlaneseq
      %v816 = vshrl.u32 %v815, 7
      %818 = vset.pattern.permute.xlu0 %v816
      %819 = vperm.xlu0 %818, %v814
      %v820 = vpop.permute.xlu0 %819
      %v821 = vperm.slane %v784, 1
      %v822 = vlaneseq
      %v823 = vshrl.u32 %v822, 7
      %825 = vset.pattern.permute.xlu0 %v823
      %826 = vperm.xlu0 %825, %v821
      %v827 = vpop.permute.xlu0 %826
      %v828 = vperm.slane %v784, 2
      %v829 = vlaneseq
      %v830 = vshrl.u32 %v829, 7
      %832 = vset.pattern.permute.xlu0 %v830
      %833 = vperm.xlu0 %832, %v828
      %v834 = vpop.permute.xlu0 %833
      %v835 = vperm.slane %v784, 3
      %v836 = vlaneseq
      %v837 = vshrl.u32 %v836, 7
      %839 = vset.pattern.permute.xlu0 %v837
      %840 = vperm.xlu0 %839, %v835
      %v841 = vpop.permute.xlu0 %840
      %v842 = vperm.slane %v784, 4
      %v843 = vlaneseq
      %v844 = vshrl.u32 %v843, 7
      %846 = vset.pattern.permute.xlu0 %v844
      %847 = vperm.xlu0 %846, %v842
      %v848 = vpop.permute.xlu0 %847
      %v849 = vperm.slane %v784, 5
      %v850 = vlaneseq
      %v851 = vshrl.u32 %v850, 7
      %853 = vset.pattern.permute.xlu0 %v851
      %854 = vperm.xlu0 %853, %v849
      %v855 = vpop.permute.xlu0 %854
      %v856 = vperm.slane %v784, 6
      %v857 = vlaneseq
      %v858 = vshrl.u32 %v857, 7
      %860 = vset.pattern.permute.xlu0 %v858
      %861 = vperm.xlu0 %860, %v856
      %v862 = vpop.permute.xlu0 %861
      %v863 = vperm.slane %v784, 7
      %v864 = vlaneseq
      %v865 = vshrl.u32 %v864, 7
      %867 = vset.pattern.permute.xlu0 %v865
      %868 = vperm.xlu0 %867, %v863
      %v869 = vpop.permute.xlu0 %868
      %v870 = vlaneseq
      %v871 = vand.u32 %v870, 127
      %vm872 = vcmp.eq.s32.totalorder %v820, %v871
      %vm873 = vcmp.eq.s32.totalorder %v827, %v871
      %vm874 = vcmp.eq.s32.totalorder %v834, %v871
      %vm875 = vcmp.eq.s32.totalorder %v841, %v871
      %vm876 = vcmp.eq.s32.totalorder %v848, %v871
      %vm877 = vcmp.eq.s32.totalorder %v855, %v871
      %vm878 = vcmp.eq.s32.totalorder %v862, %v871
      %vm879 = vcmp.eq.s32.totalorder %v869, %v871
      %v881 = vrot.slane %v811, 1
      %v882 = vrot.slane %v811, 2
      %v883 = vrot.slane %v811, 3
      %v884 = vrot.slane %v811, 4
      %v885 = vrot.slane %v811, 5
      %v886 = vrot.slane %v811, 6
      %v887 = vrot.slane %v811, 7
      %v888 = vperm.slane %v811, 0
      %v889 = vperm.slane %v881, 0
      %v890 = vperm.slane %v882, 0
      %v891 = vperm.slane %v883, 0
      %v892 = vperm.slane %v884, 0
      %v893 = vperm.slane %v885, 0
      %v894 = vperm.slane %v886, 0
      %v895 = vperm.slane %v887, 0
      %v904 = vsel %vm872, %v888, 0.0
      %v905 = vsel %vm873, %v889, 0.0
      %v906 = vsel %vm874, %v890, 0.0
      %v907 = vsel %vm875, %v891, 0.0
      %v908 = vsel %vm876, %v892, 0.0
      %v909 = vsel %vm877, %v893, 0.0
      %v910 = vsel %vm878, %v894, 0.0
      %v911 = vsel %vm879, %v895, 0.0
      %vm912 = vcmask 72704
      %v913 = vsel %vm912, %v904, 0.0
      %914 = vadd.xlane.f32.xlu0 %v913
      %v915 = vpop.xlane.xlu0 %914
      %v916 = vsel %vm912, %v905, 0.0
      %917 = vadd.xlane.f32.xlu0 %v916
      %v918 = vpop.xlane.xlu0 %917
      %v919 = vsel %vm912, %v906, 0.0
      %920 = vadd.xlane.f32.xlu0 %v919
      %v921 = vpop.xlane.xlu0 %920
      %v922 = vsel %vm912, %v907, 0.0
      %923 = vadd.xlane.f32.xlu0 %v922
      %v924 = vpop.xlane.xlu0 %923
      %v925 = vsel %vm912, %v908, 0.0
      %926 = vadd.xlane.f32.xlu0 %v925
      %v927 = vpop.xlane.xlu0 %926
      %v928 = vsel %vm912, %v909, 0.0
      %929 = vadd.xlane.f32.xlu0 %v928
      %v930 = vpop.xlane.xlu0 %929
      %v931 = vsel %vm912, %v910, 0.0
      %932 = vadd.xlane.f32.xlu0 %v931
      %v933 = vpop.xlane.xlu0 %932
      %v934 = vsel %vm912, %v911, 0.0
      %935 = vadd.xlane.f32.xlu0 %v934
      %v936 = vpop.xlane.xlu0 %935
      %938 = vrot.lane.b32.xlu0 %v788, 96
      %v939 = vpop.permute.xlu0 %938
      %v948 = vperm.slane %v915, %v871
      %v949 = vperm.slane %v918, %v871
      %v950 = vperm.slane %v921, %v871
      %v951 = vperm.slane %v924, %v871
      %v952 = vperm.slane %v927, %v871
      %v953 = vperm.slane %v930, %v871
      %v954 = vperm.slane %v933, %v871
      %v955 = vperm.slane %v936, %v871
      %vm956 = vcmask 1041409
      %v957 = vsel %vm956, %v949, %v948
      %vm958 = vcmask 1042434
      %v959 = vsel %vm958, %v950, %v957
      %vm960 = vcmask 1043459
      %v961 = vsel %vm960, %v951, %v959
      %vm962 = vcmask 1044484
      %v963 = vsel %vm962, %v952, %v961
      %vm964 = vcmask 1045509
      %v965 = vsel %vm964, %v953, %v963
      %vm966 = vcmask 1046534
      %v967 = vsel %vm966, %v954, %v965
      %vm968 = vcmask 1047559
      %v969 = vsel %vm968, %v955, %v967
      %v972 = vsel %vm793, %v788, 0
      %v975 = vsel %vm793, %v939, 0
      %977 = vmatpush.bf16.xpose.msra.mxu0 0
      %978 = vmatpush.bf16.xpose.msra.mxu0 0
      %979 = vmatpush.bf16.xpose.msra.mxu0 0
      %980 = vmatpush.bf16.xpose.msra.mxu0 0
      %981 = vmatpush.bf16.xpose.msra.mxu0 0
      %982 = vmatpush.bf16.xpose.msra.mxu0 0
      %983 = vmatpush.bf16.xpose.msra.mxu0 0
      %984 = vmatpush.bf16.xpose.msra.mxu0 %v975
      %985 = vmatmul.bf16.gmra.mxu0 %v972
      %v986 = vpop.f32.mrf.mxu0
      %v987 = vadd.f32 %v969, %v986
      %v988 = vpop.f32.mrf.mxu0
      %989 = vdwg.mxu0
      %v990 = vmul.f32 %v987, 0.35355338
      %v992 = vperm.slane %v782, 0
      %v994 = vadd.f32 %v990, %v992
      %v995 = vsel %vm793, %v994, -inf
      %996 = vmax.xlane.f32.xlu0 %v995
      %v997 = vpop.xlane.xlu0 %996
      %v998 = vsub.f32 %v994, %v997
      %v999 = vmul.f32 %v998, 1.442695
      %v1000 = vpow.pop %v999
      %v1001 = vsel %vm793, %v1000, 0.0
      %1002 = vadd.xlane.f32.xlu0 %v1001
      %v1003 = vpop.xlane.xlu0 %1002
      %v1004 = vpack.c.bf16 %v1000, %v1000
      %1005 = vrot.lane.b32.xlu0 %v788, 64
      %v1006 = vpop.permute.xlu0 %1005
      %v1008 = vsel %vm793, %v1004, 0
      %v1011 = vsel %vm797, %v1006, 0
      %1013 = vmatpush.bf16.msra.mxu0 0
      %1014 = vmatpush.bf16.msra.mxu0 0
      %1015 = vmatpush.bf16.msra.mxu0 0
      %1016 = vmatpush.bf16.msra.mxu0 0
      %1017 = vmatpush.bf16.msra.mxu0 0
      %1018 = vmatpush.bf16.msra.mxu0 0
      %1019 = vmatpush.bf16.msra.mxu0 0
      %1020 = vmatpush.bf16.msra.mxu0 %v1011
      %1021 = vmatmul.bf16.gmra.mxu0 %v1008
      %v1022 = vpop.f32.mrf.mxu0
      %v1023 = vadd.f32 0.0, %v1022
      %v1024 = vpop.f32.mrf.mxu0
      %1025 = vdwg.mxu0
      %v1026 = vrcp.pop %v1003
      %v1027 = vmul.f32 %v1003, %v1026
      %v1028 = vsub.f32 1.0, %v1027
      %v1029 = vmul.f32 %v1026, %v1028
      %v1030 = vadd.f32 %v1026, %v1029
      %vm1031 = vweird.f32 %v1003
      %vm1032 = vweird.f32 %v1026
      %vm1033 = vmor %vm1031, %vm1032
      %v1034 = vsel %vm1033, %v1026, %v1030
      %v1035 = vand.u32 2147483647, %v1003
      %vm1036 = vcmp.eq.f32.partialorder %v1035, 8.507059e+37
      %v1037 = vand.u32 %v1003, 2147483648
      %v1038 = vor.u32 1.1754944e-38, %v1037
      %v1039 = vsel %vm1036, %v1038, %v1034
      %v1040 = vmul.f32 %v1023, %v1039
      %v1041 = vperm.slane %v783, 1
      %1043 = vrot.lane.b32.xlu0 %v1041, 8
      %v1044 = vpop.permute.xlu0 %1043
      %v1046 = vadd.f32 %v781, %v1044
      %v1047 = vpack.c.bf16 %v1046, %v1046
      %v1048 = vpack.c.bf16 %v787, %v787
      %1050 = vrot.lane.b32.xlu0 %v1047, 120
      %v1051 = vpop.permute.xlu0 %1050
      %v1053 = vsel %vm793, %v1051, 0
      %v1056 = vsel %vm797, %v1048, 0
      %1058 = vmatpush.bf16.msra.mxu0 0
      %1059 = vmatpush.bf16.msra.mxu0 0
      %1060 = vmatpush.bf16.msra.mxu0 0
      %1061 = vmatpush.bf16.msra.mxu0 0
      %1062 = vmatpush.bf16.msra.mxu0 0
      %1063 = vmatpush.bf16.msra.mxu0 0
      %1064 = vmatpush.bf16.msra.mxu0 0
      %1065 = vmatpush.bf16.msra.mxu0 %v1056
      %1066 = vmatmul.bf16.gmra.mxu0 %v1053
      %v1067 = vpop.f32.mrf.mxu0
      %v1068 = vadd.f32 0.0, %v1067
      %v1069 = vpop.f32.mrf.mxu0
      %1070 = vdwg.mxu0
      %v1071 = vperm.slane %v785, 0
      %v1072 = vlaneseq
      %v1073 = vshrl.u32 %v1072, 7
      %1075 = vset.pattern.permute.xlu0 %v1073
      %1076 = vperm.xlu0 %1075, %v1071
      %v1077 = vpop.permute.xlu0 %1076
      %v1078 = vperm.slane %v785, 1
      %v1079 = vlaneseq
      %v1080 = vshrl.u32 %v1079, 7
      %1082 = vset.pattern.permute.xlu0 %v1080
      %1083 = vperm.xlu0 %1082, %v1078
      %v1084 = vpop.permute.xlu0 %1083
      %v1085 = vperm.slane %v785, 2
      %v1086 = vlaneseq
      %v1087 = vshrl.u32 %v1086, 7
      %1089 = vset.pattern.permute.xlu0 %v1087
      %1090 = vperm.xlu0 %1089, %v1085
      %v1091 = vpop.permute.xlu0 %1090
      %v1092 = vperm.slane %v785, 3
      %v1093 = vlaneseq
      %v1094 = vshrl.u32 %v1093, 7
      %1096 = vset.pattern.permute.xlu0 %v1094
      %1097 = vperm.xlu0 %1096, %v1092
      %v1098 = vpop.permute.xlu0 %1097
      %v1099 = vperm.slane %v785, 4
      %v1100 = vlaneseq
      %v1101 = vshrl.u32 %v1100, 7
      %1103 = vset.pattern.permute.xlu0 %v1101
      %1104 = vperm.xlu0 %1103, %v1099
      %v1105 = vpop.permute.xlu0 %1104
      %v1106 = vperm.slane %v785, 5
      %v1107 = vlaneseq
      %v1108 = vshrl.u32 %v1107, 7
      %1110 = vset.pattern.permute.xlu0 %v1108
      %1111 = vperm.xlu0 %1110, %v1106
      %v1112 = vpop.permute.xlu0 %1111
      %v1113 = vperm.slane %v785, 6
      %v1114 = vlaneseq
      %v1115 = vshrl.u32 %v1114, 7
      %1117 = vset.pattern.permute.xlu0 %v1115
      %1118 = vperm.xlu0 %1117, %v1113
      %v1119 = vpop.permute.xlu0 %1118
      %v1120 = vperm.slane %v785, 7
      %v1121 = vlaneseq
      %v1122 = vshrl.u32 %v1121, 7
      %1124 = vset.pattern.permute.xlu0 %v1122
      %1125 = vperm.xlu0 %1124, %v1120
      %v1126 = vpop.permute.xlu0 %1125
      %vm1127 = vcmp.eq.s32.totalorder %v1077, %v871
      %vm1128 = vcmp.eq.s32.totalorder %v1084, %v871
      %vm1129 = vcmp.eq.s32.totalorder %v1091, %v871
      %vm1130 = vcmp.eq.s32.totalorder %v1098, %v871
      %vm1131 = vcmp.eq.s32.totalorder %v1105, %v871
      %vm1132 = vcmp.eq.s32.totalorder %v1112, %v871
      %vm1133 = vcmp.eq.s32.totalorder %v1119, %v871
      %vm1134 = vcmp.eq.s32.totalorder %v1126, %v871
      %v1136 = vrot.slane %v1068, 1
      %v1137 = vrot.slane %v1068, 2
      %v1138 = vrot.slane %v1068, 3
      %v1139 = vrot.slane %v1068, 4
      %v1140 = vrot.slane %v1068, 5
      %v1141 = vrot.slane %v1068, 6
      %v1142 = vrot.slane %v1068, 7
      %v1143 = vperm.slane %v1068, 0
      %v1144 = vperm.slane %v1136, 0
      %v1145 = vperm.slane %v1137, 0
      %v1146 = vperm.slane %v1138, 0
      %v1147 = vperm.slane %v1139, 0
      %v1148 = vperm.slane %v1140, 0
      %v1149 = vperm.slane %v1141, 0
      %v1150 = vperm.slane %v1142, 0
      %v1159 = vsel %vm1127, %v1143, 0.0
      %v1160 = vsel %vm1128, %v1144, 0.0
      %v1161 = vsel %vm1129, %v1145, 0.0
      %v1162 = vsel %vm1130, %v1146, 0.0
      %v1163 = vsel %vm1131, %v1147, 0.0
      %v1164 = vsel %vm1132, %v1148, 0.0
      %v1165 = vsel %vm1133, %v1149, 0.0
      %v1166 = vsel %vm1134, %v1150, 0.0
      %v1167 = vsel %vm912, %v1159, 0.0
      %1168 = vadd.xlane.f32.xlu0 %v1167
      %v1169 = vpop.xlane.xlu0 %1168
      %v1170 = vsel %vm912, %v1160, 0.0
      %1171 = vadd.xlane.f32.xlu0 %v1170
      %v1172 = vpop.xlane.xlu0 %1171
      %v1173 = vsel %vm912, %v1161, 0.0
      %1174 = vadd.xlane.f32.xlu0 %v1173
      %v1175 = vpop.xlane.xlu0 %1174
      %v1176 = vsel %vm912, %v1162, 0.0
      %1177 = vadd.xlane.f32.xlu0 %v1176
      %v1178 = vpop.xlane.xlu0 %1177
      %v1179 = vsel %vm912, %v1163, 0.0
      %1180 = vadd.xlane.f32.xlu0 %v1179
      %v1181 = vpop.xlane.xlu0 %1180
      %v1182 = vsel %vm912, %v1164, 0.0
      %1183 = vadd.xlane.f32.xlu0 %v1182
      %v1184 = vpop.xlane.xlu0 %1183
      %v1185 = vsel %vm912, %v1165, 0.0
      %1186 = vadd.xlane.f32.xlu0 %v1185
      %v1187 = vpop.xlane.xlu0 %1186
      %v1188 = vsel %vm912, %v1166, 0.0
      %1189 = vadd.xlane.f32.xlu0 %v1188
      %v1190 = vpop.xlane.xlu0 %1189
      %1191 = vrot.lane.b32.xlu0 %v788, 120
      %v1192 = vpop.permute.xlu0 %1191
      %1193 = vrot.lane.b32.xlu0 %v788, 88
      %v1194 = vpop.permute.xlu0 %1193
      %v1203 = vperm.slane %v1169, %v871
      %v1204 = vperm.slane %v1172, %v871
      %v1205 = vperm.slane %v1175, %v871
      %v1206 = vperm.slane %v1178, %v871
      %v1207 = vperm.slane %v1181, %v871
      %v1208 = vperm.slane %v1184, %v871
      %v1209 = vperm.slane %v1187, %v871
      %v1210 = vperm.slane %v1190, %v871
      %v1211 = vsel %vm956, %v1204, %v1203
      %v1212 = vsel %vm958, %v1205, %v1211
      %v1213 = vsel %vm960, %v1206, %v1212
      %v1214 = vsel %vm962, %v1207, %v1213
      %v1215 = vsel %vm964, %v1208, %v1214
      %v1216 = vsel %vm966, %v1209, %v1215
      %v1217 = vsel %vm968, %v1210, %v1216
      %v1220 = vsel %vm793, %v1192, 0
      %v1223 = vsel %vm793, %v1194, 0
      %1225 = vmatpush.bf16.xpose.msra.mxu0 0
      %1226 = vmatpush.bf16.xpose.msra.mxu0 0
      %1227 = vmatpush.bf16.xpose.msra.mxu0 0
      %1228 = vmatpush.bf16.xpose.msra.mxu0 0
      %1229 = vmatpush.bf16.xpose.msra.mxu0 0
      %1230 = vmatpush.bf16.xpose.msra.mxu0 0
      %1231 = vmatpush.bf16.xpose.msra.mxu0 0
      %1232 = vmatpush.bf16.xpose.msra.mxu0 %v1223
      %1233 = vmatmul.bf16.gmra.mxu0 %v1220
      %v1234 = vpop.f32.mrf.mxu0
      %v1235 = vadd.f32 %v1217, %v1234
      %v1236 = vpop.f32.mrf.mxu0
      %1237 = vdwg.mxu0
      %v1238 = vmul.f32 %v1235, 0.35355338
      %v1239 = vadd.f32 %v1238, %v992
      %v1240 = vsel %vm793, %v1239, -inf
      %1241 = vmax.xlane.f32.xlu0 %v1240
      %v1242 = vpop.xlane.xlu0 %1241
      %v1243 = vsub.f32 %v1239, %v1242
      %v1244 = vmul.f32 %v1243, 1.442695
      %v1245 = vpow.pop %v1244
      %v1246 = vsel %vm793, %v1245, 0.0
      %1247 = vadd.xlane.f32.xlu0 %v1246
      %v1248 = vpop.xlane.xlu0 %1247
      %v1249 = vpack.c.bf16 %v1245, %v1245
      %1250 = vrot.lane.b32.xlu0 %v788, 56
      %v1251 = vpop.permute.xlu0 %1250
      %v1253 = vsel %vm793, %v1249, 0
      %v1256 = vsel %vm797, %v1251, 0
      %1258 = vmatpush.bf16.msra.mxu0 0
      %1259 = vmatpush.bf16.msra.mxu0 0
      %1260 = vmatpush.bf16.msra.mxu0 0
      %1261 = vmatpush.bf16.msra.mxu0 0
      %1262 = vmatpush.bf16.msra.mxu0 0
      %1263 = vmatpush.bf16.msra.mxu0 0
      %1264 = vmatpush.bf16.msra.mxu0 0
      %1265 = vmatpush.bf16.msra.mxu0 %v1256
      %1266 = vmatmul.bf16.gmra.mxu0 %v1253
      %v1267 = vpop.f32.mrf.mxu0
      %v1268 = vadd.f32 0.0, %v1267
      %v1269 = vpop.f32.mrf.mxu0
      %1270 = vdwg.mxu0
      %v1271 = vrcp.pop %v1248
      %v1272 = vmul.f32 %v1248, %v1271
      %v1273 = vsub.f32 1.0, %v1272
      %v1274 = vmul.f32 %v1271, %v1273
      %v1275 = vadd.f32 %v1271, %v1274
      %vm1276 = vweird.f32 %v1248
      %vm1277 = vweird.f32 %v1271
      %vm1278 = vmor %vm1276, %vm1277
      %v1279 = vsel %vm1278, %v1271, %v1275
      %v1280 = vand.u32 2147483647, %v1248
      %vm1281 = vcmp.eq.f32.partialorder %v1280, 8.507059e+37
      %v1282 = vand.u32 %v1248, 2147483648
      %v1283 = vor.u32 1.1754944e-38, %v1282
      %v1284 = vsel %vm1281, %v1283, %v1279
      %v1285 = vmul.f32 %v1268, %v1284
      %1286 = vrot.lane.b32.xlu0 %v788, 112
      %v1287 = vpop.permute.xlu0 %1286
      %1288 = vrot.lane.b32.xlu0 %v788, 80
      %v1289 = vpop.permute.xlu0 %1288
      %v1291 = vsel %vm793, %v1287, 0
      %v1294 = vsel %vm793, %v1289, 0
      %1296 = vmatpush.bf16.xpose.msra.mxu0 0
      %1297 = vmatpush.bf16.xpose.msra.mxu0 0
      %1298 = vmatpush.bf16.xpose.msra.mxu0 0
      %1299 = vmatpush.bf16.xpose.msra.mxu0 0
      %1300 = vmatpush.bf16.xpose.msra.mxu0 0
      %1301 = vmatpush.bf16.xpose.msra.mxu0 0
      %1302 = vmatpush.bf16.xpose.msra.mxu0 0
      %1303 = vmatpush.bf16.xpose.msra.mxu0 %v1294
      %1304 = vmatmul.bf16.gmra.mxu0 %v1291
      %v1305 = vpop.f32.mrf.mxu0
      %v1306 = vadd.f32 0.0, %v1305
      %v1307 = vpop.f32.mrf.mxu0
      %1308 = vdwg.mxu0
      %v1309 = vmul.f32 %v1306, 0.35355338
      %v1310 = vadd.f32 %v1309, %v992
      %v1311 = vsel %vm793, %v1310, -inf
      %1312 = vmax.xlane.f32.xlu0 %v1311
      %v1313 = vpop.xlane.xlu0 %1312
      %v1314 = vsub.f32 %v1310, %v1313
      %v1315 = vmul.f32 %v1314, 1.442695
      %v1316 = vpow.pop %v1315
      %v1317 = vsel %vm793, %v1316, 0.0
      %1318 = vadd.xlane.f32.xlu0 %v1317
      %v1319 = vpop.xlane.xlu0 %1318
      %v1320 = vpack.c.bf16 %v1316, %v1316
      %1321 = vrot.lane.b32.xlu0 %v788, 48
      %v1322 = vpop.permute.xlu0 %1321
      %v1324 = vsel %vm793, %v1320, 0
      %v1327 = vsel %vm797, %v1322, 0
      %1329 = vmatpush.bf16.msra.mxu0 0
      %1330 = vmatpush.bf16.msra.mxu0 0
      %1331 = vmatpush.bf16.msra.mxu0 0
      %1332 = vmatpush.bf16.msra.mxu0 0
      %1333 = vmatpush.bf16.msra.mxu0 0
      %1334 = vmatpush.bf16.msra.mxu0 0
      %1335 = vmatpush.bf16.msra.mxu0 0
      %1336 = vmatpush.bf16.msra.mxu0 %v1327
      %1337 = vmatmul.bf16.gmra.mxu0 %v1324
      %v1338 = vpop.f32.mrf.mxu0
      %v1339 = vadd.f32 0.0, %v1338
      %v1340 = vpop.f32.mrf.mxu0
      %1341 = vdwg.mxu0
      %v1342 = vrcp.pop %v1319
      %v1343 = vmul.f32 %v1319, %v1342
      %v1344 = vsub.f32 1.0, %v1343
      %v1345 = vmul.f32 %v1342, %v1344
      %v1346 = vadd.f32 %v1342, %v1345
      %vm1347 = vweird.f32 %v1319
      %vm1348 = vweird.f32 %v1342
      %vm1349 = vmor %vm1347, %vm1348
      %v1350 = vsel %vm1349, %v1342, %v1346
      %v1351 = vand.u32 2147483647, %v1319
      %vm1352 = vcmp.eq.f32.partialorder %v1351, 8.507059e+37
      %v1353 = vand.u32 %v1319, 2147483648
      %v1354 = vor.u32 1.1754944e-38, %v1353
      %v1355 = vsel %vm1352, %v1354, %v1350
      %v1356 = vmul.f32 %v1339, %v1355
      %1357 = vrot.lane.b32.xlu0 %v788, 104
      %v1358 = vpop.permute.xlu0 %1357
      %1359 = vrot.lane.b32.xlu0 %v788, 72
      %v1360 = vpop.permute.xlu0 %1359
      %v1362 = vsel %vm793, %v1358, 0
      %v1365 = vsel %vm793, %v1360, 0
      %1367 = vmatpush.bf16.xpose.msra.mxu0 0
      %1368 = vmatpush.bf16.xpose.msra.mxu0 0
      %1369 = vmatpush.bf16.xpose.msra.mxu0 0
      %1370 = vmatpush.bf16.xpose.msra.mxu0 0
      %1371 = vmatpush.bf16.xpose.msra.mxu0 0
      %1372 = vmatpush.bf16.xpose.msra.mxu0 0
      %1373 = vmatpush.bf16.xpose.msra.mxu0 0
      %1374 = vmatpush.bf16.xpose.msra.mxu0 %v1365
      %1375 = vmatmul.bf16.gmra.mxu0 %v1362
      %v1376 = vpop.f32.mrf.mxu0
      %v1377 = vadd.f32 0.0, %v1376
      %v1378 = vpop.f32.mrf.mxu0
      %1379 = vdwg.mxu0
      %v1380 = vmul.f32 %v1377, 0.35355338
      %v1381 = vadd.f32 %v1380, %v992
      %v1382 = vsel %vm793, %v1381, -inf
      %1383 = vmax.xlane.f32.xlu0 %v1382
      %v1384 = vpop.xlane.xlu0 %1383
      %v1385 = vsub.f32 %v1381, %v1384
      %v1386 = vmul.f32 %v1385, 1.442695
      %v1387 = vpow.pop %v1386
      %v1388 = vsel %vm793, %v1387, 0.0
      %1389 = vadd.xlane.f32.xlu0 %v1388
      %v1390 = vpop.xlane.xlu0 %1389
      %v1391 = vpack.c.bf16 %v1387, %v1387
      %1392 = vrot.lane.b32.xlu0 %v788, 40
      %v1393 = vpop.permute.xlu0 %1392
      %v1395 = vsel %vm793, %v1391, 0
      %v1398 = vsel %vm797, %v1393, 0
      %1400 = vmatpush.bf16.msra.mxu0 0
      %1401 = vmatpush.bf16.msra.mxu0 0
      %1402 = vmatpush.bf16.msra.mxu0 0
      %1403 = vmatpush.bf16.msra.mxu0 0
      %1404 = vmatpush.bf16.msra.mxu0 0
      %1405 = vmatpush.bf16.msra.mxu0 0
      %1406 = vmatpush.bf16.msra.mxu0 0
      %1407 = vmatpush.bf16.msra.mxu0 %v1398
      %1408 = vmatmul.bf16.gmra.mxu0 %v1395
      %v1409 = vpop.f32.mrf.mxu0
      %v1410 = vadd.f32 0.0, %v1409
      %v1411 = vpop.f32.mrf.mxu0
      %1412 = vdwg.mxu0
      %v1413 = vrcp.pop %v1390
      %v1414 = vmul.f32 %v1390, %v1413
      %v1415 = vsub.f32 1.0, %v1414
      %v1416 = vmul.f32 %v1413, %v1415
      %v1417 = vadd.f32 %v1413, %v1416
      %vm1418 = vweird.f32 %v1390
      %vm1419 = vweird.f32 %v1413
      %vm1420 = vmor %vm1418, %vm1419
      %v1421 = vsel %vm1420, %v1413, %v1417
      %v1422 = vand.u32 2147483647, %v1390
      %vm1423 = vcmp.eq.f32.partialorder %v1422, 8.507059e+37
      %v1424 = vand.u32 %v1390, 2147483648
      %v1425 = vor.u32 1.1754944e-38, %v1424
      %v1426 = vsel %vm1423, %v1425, %v1421
      %v1427 = vmul.f32 %v1410, %v1426
      %1429 = vrot.lane.b32.xlu0 %v1285, 8
      %v1430 = vpop.permute.xlu0 %1429
      %1433 = vrot.lane.b32.xlu0 %v1356, 16
      %v1434 = vpop.permute.xlu0 %1433
      %1437 = vrot.lane.b32.xlu0 %v1427, 24
      %v1438 = vpop.permute.xlu0 %1437
      %v1440 = vsel %vm793, %v1040, %v1430
      %vm1441 = vcmask 130048
      %v1442 = vsel %vm1441, %v1440, %v1434
      %vm1443 = vcmask 195584
      %v1444 = vsel %vm1443, %v1442, %v1438
      %v1445 = vpack.c.bf16 %v1444, %v1444
      %v1446 = vld [vmem:[%s11] sm:$0xf]
      %v1447 = vld [vmem:[%s11 + $0x4] sm:$0xf]
      %v1448 = vld [vmem:[%s11 + $0x8] sm:$0xf]
      %v1449 = vld [vmem:[%s11 + $0xc] sm:$0xf]
      %v1454 = vunpack.c.l.b16 %v1446
      %v1455 = vunpack.c.l.b16 %v1447
      %v1456 = vunpack.c.l.b16 %v1448
      %v1457 = vunpack.c.l.b16 %v1449
      %v1458 = vpack.c.b16 %v1455, %v1454
      %v1459 = vpack.c.b16 %v1457, %v1456
      %v1463 = vsel %vm653, %v1445, 0
      %1465 = vmatpush.bf16.msra.mxu0 0
      %1466 = vmatpush.bf16.msra.mxu0 0
      %1467 = vmatpush.bf16.msra.mxu0 0
      %1468 = vmatpush.bf16.msra.mxu0 0
      %1469 = vmatpush.bf16.msra.mxu0 0
      %1470 = vmatpush.bf16.msra.mxu0 0
      %1471 = vmatpush.bf16.msra.mxu0 %v1459
      %1472 = vmatpush.bf16.msra.mxu0 %v1458
      %1473 = vmatmul.bf16.gmra.mxu0 %v1463
      %v1474 = vpop.f32.mrf.mxu0
      %v1475 = vadd.f32 0.0, %v1474
      %v1476 = vpop.f32.mrf.mxu0
      %1477 = vdwg.mxu0
      %v1478 = vadd.f32 %v652, %v1475
      %v1479 = vld [vmem:[%s12] sm:$0x1]
      %v1481 = vperm.slane %v1479, 0
      %v1483 = vadd.f32 %v1478, %v1481
      %v1484 = vsel %vm653, %v1483, 0.0
      %1485 = vadd.xlane.f32.xlu0 %v1484
      %v1486 = vpop.xlane.xlu0 %1485
      %v1487 = vmul.f32 %v1486, %v663
      %v1488 = vsub.f32 %v1483, %v1487
      %v1489 = vmul.f32 %v1488, %v1488
      %v1490 = vsel %vm653, %v1489, 0.0
      %1491 = vadd.xlane.f32.xlu0 %v1490
      %v1492 = vpop.xlane.xlu0 %1491
      %v1493 = vmul.f32 %v1492, %v663
      %v1494 = vadd.f32 %v1493, 1e-05
      %v1495 = vrsqrt.pop %v1494
      %v1496 = vmul.f32 %v1495, %v1494
      %v1497 = vmul.f32 %v1496, %v1495
      %v1498 = vmul.f32 0.5, %v1497
      %v1499 = vsub.f32 1.5, %v1498
      %v1500 = vmul.f32 %v1495, %v1499
      %vm1501 = vweird.f32 %v1494
      %vm1502 = vweird.f32 %v1495
      %vm1503 = vmor %vm1501, %vm1502
      %v1504 = vsel %vm1503, %v1495, %v1500
      %v1505 = vmul.f32 %v1488, %v1504
      %v1506 = vld [vmem:[%s13] sm:$0x1]
      %v1508 = vperm.slane %v1506, 0
      %v1510 = vmul.f32 %v1505, %v1508
      %v1511 = vld [vmem:[%s14] sm:$0x1]
      %v1513 = vperm.slane %v1511, 0
      %v1515 = vadd.f32 %v1510, %v1513
      %v1516 = vpack.c.bf16 %v1515, %v1515
      %v1517 = vld [vmem:[%s15] sm:$0xf]
      %v1518 = vld [vmem:[%s15 + $0x4] sm:$0xf]
      %v1519 = vld [vmem:[%s15 + $0x8] sm:$0xf]
      %v1520 = vld [vmem:[%s15 + $0xc] sm:$0xf]
      %v1521 = vld [vmem:[%s16] sm:$0x1]
      %v1523 = vperm.slane %v1521, 0
      %v1529 = vunpack.c.l.b16 %v1517
      %v1530 = vunpack.c.l.b16 %v1518
      %v1531 = vunpack.c.l.b16 %v1519
      %v1532 = vunpack.c.l.b16 %v1520
      %v1533 = vpack.c.b16 %v1530, %v1529
      %v1534 = vpack.c.b16 %v1532, %v1531
      %v1538 = vsel %vm653, %v1516, 0
      %1540 = vmatpush.bf16.msra.mxu0 0
      %1541 = vmatpush.bf16.msra.mxu0 0
      %1542 = vmatpush.bf16.msra.mxu0 0
      %1543 = vmatpush.bf16.msra.mxu0 0
      %1544 = vmatpush.bf16.msra.mxu0 0
      %1545 = vmatpush.bf16.msra.mxu0 0
      %1546 = vmatpush.bf16.msra.mxu0 %v1534
      %1547 = vmatpush.bf16.msra.mxu0 %v1533
      %1548 = vmatmul.bf16.gmra.mxu0 %v1538
      %v1549 = vpop.f32.mrf.mxu0
      %v1550 = vadd.f32 %v1523, %v1549
      %v1551 = vpop.f32.mrf.mxu0
      %1552 = vdwg.mxu0
      %v1553 = vmul.f32 %v1550, %v1550
      %v1554 = vmul.f32 %v1550, %v1553
      %v1555 = vmul.f32 %v1554, 0.044715
      %v1556 = vadd.f32 %v1550, %v1555
      %v1557 = vmul.f32 %v1556, 0.7978846
      %v1558 = vtanh.pop %v1557
      %v1559 = vadd.f32 %v1558, 1.0
      %v1560 = vmul.f32 %v1559, 0.5
      %v1561 = vmul.f32 %v1550, %v1560
      %v1562 = vpack.c.bf16 %v1561, %v1561
      %v1563 = vld [vmem:[%s17] sm:$0xf]
      %v1564 = vld [vmem:[%s17 + $0x4] sm:$0xf]
      %v1565 = vld [vmem:[%s17 + $0x8] sm:$0xf]
      %v1566 = vld [vmem:[%s17 + $0xc] sm:$0xf]
      %v1567 = vld [vmem:[%s17 + $0x10] sm:$0xf]
      %v1568 = vld [vmem:[%s17 + $0x14] sm:$0xf]
      %v1569 = vld [vmem:[%s17 + $0x18] sm:$0xf]
      %v1570 = vld [vmem:[%s17 + $0x1c] sm:$0xf]
      %v1571 = vld [vmem:[%s17 + $0x20] sm:$0xf]
      %v1572 = vld [vmem:[%s17 + $0x24] sm:$0xf]
      %v1573 = vld [vmem:[%s17 + $0x28] sm:$0xf]
      %v1574 = vld [vmem:[%s17 + $0x2c] sm:$0xf]
      %v1575 = vld [vmem:[%s17 + $0x30] sm:$0xf]
      %v1576 = vld [vmem:[%s17 + $0x34] sm:$0xf]
      %v1577 = vld [vmem:[%s17 + $0x38] sm:$0xf]
      %v1578 = vld [vmem:[%s17 + $0x3c] sm:$0xf]
      %v1595 = vunpack.c.l.b16 %v1563
      %v1596 = vunpack.c.l.b16 %v1564
      %v1597 = vunpack.c.l.b16 %v1565
      %v1598 = vunpack.c.l.b16 %v1566
      %v1599 = vunpack.c.l.b16 %v1567
      %v1600 = vunpack.c.l.b16 %v1568
      %v1601 = vunpack.c.l.b16 %v1569
      %v1602 = vunpack.c.l.b16 %v1570
      %v1603 = vunpack.c.l.b16 %v1571
      %v1604 = vunpack.c.l.b16 %v1572
      %v1605 = vunpack.c.l.b16 %v1573
      %v1606 = vunpack.c.l.b16 %v1574
      %v1607 = vunpack.c.l.b16 %v1575
      %v1608 = vunpack.c.l.b16 %v1576
      %v1609 = vunpack.c.l.b16 %v1577
      %v1610 = vunpack.c.l.b16 %v1578
      %v1611 = vpack.c.b16 %v1596, %v1595
      %v1612 = vpack.c.b16 %v1598, %v1597
      %v1613 = vpack.c.b16 %v1600, %v1599
      %v1614 = vpack.c.b16 %v1602, %v1601
      %v1615 = vpack.c.b16 %v1604, %v1603
      %v1616 = vpack.c.b16 %v1606, %v1605
      %v1617 = vpack.c.b16 %v1608, %v1607
      %v1618 = vpack.c.b16 %v1610, %v1609
      %1627 = vmatpush.bf16.msra.mxu0 %v1618
      %1628 = vmatpush.bf16.msra.mxu0 %v1617
      %1629 = vmatpush.bf16.msra.mxu0 %v1616
      %1630 = vmatpush.bf16.msra.mxu0 %v1615
      %1631 = vmatpush.bf16.msra.mxu0 %v1614
      %1632 = vmatpush.bf16.msra.mxu0 %v1613
      %1633 = vmatpush.bf16.msra.mxu0 %v1612
      %1634 = vmatpush.bf16.msra.mxu0 %v1611
      %1635 = vmatmul.bf16.gmra.mxu0 %v1562
      %v1636 = vpop.f32.mrf.mxu0
      %v1637 = vadd.f32 0.0, %v1636
      %v1638 = vpop.f32.mrf.mxu0
      %1639 = vdwg.mxu0
      %v1640 = vadd.f32 %v1483, %v1637
      %v1641 = vld [vmem:[%s18] sm:$0x1]
      %v1643 = vperm.slane %v1641, 0
      %v1645 = vadd.f32 %v1640, %v1643
      %1646 = vst.msk [vmem:[%s650] sm:$0xff] %vm653, %v1645
      %p1647 = scmp.lt.s32.totalorder %s30, 1
      %s1648 = scalar_select %p1647, %s30, 1
      %s1649 = smul.addr %s1648, 8
      %s1650 = scalar_lea.vmem %s19, %s1649
      // Predicated region
      $region97: #{encoder_forward.3} parent=95 // pred_check
        %p1651 = pneg %p467
      $region98: #{encoder_forward.3} parent=95 // pred_check_branch
        %1653 = sbr.rel (%p1651) target = $region100
      $region99: #{encoder_forward.3} parent=95 // pred_region
        _
      $region100: #{encoder_forward.3} parent=95 // pred_fallthru
        _
    $region96: #{encoder_forward.3} parent=5 // pred_fallthru
      _
    %p1654 = scmp.le.s32.totalorder 2, %s25
    // Predicated region
    $region101: #{encoder_forward.3} parent=5 // pred_check
      %p1655 = pneg %p1654
    $region102: #{encoder_forward.3} parent=5 // pred_check_branch
      %1657 = sbr.rel (%p1655) target = $region104
    $region103: #{encoder_forward.3} parent=5 // pred_region
      %s1658 = ssub.s32 %s25, 2
      // Predicated region
      $region105: #{encoder_forward.3} parent=103 // pred_check
        %p1659 = pneg %p473
      $region106: #{encoder_forward.3} parent=103 // pred_check_branch
        %1661 = sbr.rel (%p1659) target = $region108
      $region107: #{encoder_forward.3} parent=103 // pred_region
        %p1662 = scmp.lt.s32.totalorder %s31, 1
        %s1663 = scalar_select %p1662, %s31, 1
        %s1664 = smul.addr %s1663, 8
        %s1665 = scalar_lea.vmem %s19, %s1664
      $region108: #{encoder_forward.3} parent=103 // pred_fallthru
        _
    $region104: #{encoder_forward.3} parent=5 // pred_fallthru
      _
  $region6: #{encoder_forward.3} parent=0 // loop_footer
    %s29 = sadd.s32 1, %s25
  $region7: #{encoder_forward.3} parent=0 // loop_footer_branch
    %24 = sbr.rel target = $region3
  $region8: #{encoder_forward.3} parent=0 // loop_exit
    _

</llo_original>
